<compile_context>
chip_gen: v7x
topology: tpu7x:2x2x1
jax: 0.10.0
libtpu: 0.0.40
codegen_flags: <defaults>
</compile_context>

<pallas_src>
import math

import jax
import jax.numpy as jnp
from jax.experimental import pallas as pl
from jax.experimental.pallas import tpu as pltpu

_BN_EPS = 1e-5
_NT_DIMS = (((1,), (1,)), ((), ()))     # contract last dims of both: A @ B^T on the MXU


# --------------------------------------------------------------------------- VMEM sizing
def _vmem_budget():
    """(vmem_limit_bytes, tile_budget_bytes) sized per TPU generation."""
    try:
        cap = int(pltpu.get_tpu_info().vmem_capacity_bytes)
    except Exception:
        cap = 64 * 1024 * 1024                       # v7x-safe fallback (smallest VMEM)
    limit = min(cap // 2, 64 * 1024 * 1024)          # 32 MiB on v7x, 64 MiB on v5e/v6e
    return limit, limit // 2                         # keep ~half for weights/acc/scratch


_VMEM_LIMIT, _TILE_BUDGET = _vmem_budget()


def _round_up(x, m):
    return ((x + m - 1) // m) * m


def _pick_hw_tile(hw_pad, bytes_per_lane):
    """Largest multiple-of-128 divisor of hw_pad whose tiles fit the VMEM budget."""
    cap = max(128, (_TILE_BUDGET // max(bytes_per_lane, 1)) // 128 * 128)
    best, t = 128, 128
    while t <= min(hw_pad, cap):
        if hw_pad % t == 0:
            best = t
        t += 128
    return best


# --------------------------------------------------------------------------- kernels
def _gram_kernel(x_ref, sxx_ref, sx_ref):
    """Per-batch-element input Gram:  Sxx += x @ x^T,  Sx += sum_pixels(x).

    x_ref:   (1, Cin, T)   activation tile (fp32 or bf16)
    sxx_ref: (1, Cin, Cin) fp32, resident over the HW-tile axis
    sx_ref:  (1, Cin, 1)   fp32, resident over the HW-tile axis
    """
    @pl.when(pl.program_id(1) == 0)
    def _():
        sxx_ref[...] = jnp.zeros_like(sxx_ref)
        sx_ref[...] = jnp.zeros_like(sx_ref)

    x = x_ref[0].astype(jnp.float32)                                    # (Cin, T)
    sxx_ref[0] += jax.lax.dot_general(x, x, _NT_DIMS,
                                      preferred_element_type=jnp.float32)
    sx_ref[0] += jnp.sum(x, axis=1, keepdims=True)                      # XLU reduce (has slack)


def _make_apply_kernel(fuse_stats, hw, tile, hw_pad):
    """out = relu(W2 @ x + shift); optionally accumulate the Gram of the ReLU output."""
    needs_mask = fuse_stats and (hw_pad != hw)

    def kernel(x_ref, w_ref, shift_ref, *out_refs):
        if fuse_stats:
            o_ref, sxx_ref, sx_ref = out_refs

            @pl.when(pl.program_id(1) == 0)
            def _():
                sxx_ref[...] = jnp.zeros_like(sxx_ref)
                sx_ref[...] = jnp.zeros_like(sx_ref)
        else:
            (o_ref,) = out_refs

        x = x_ref[0].astype(jnp.bfloat16)           # in-kernel cast (no-op when x is bf16)
        y = jnp.dot(w_ref[...], x, preferred_element_type=jnp.float32)  # (Cout, T)
        y = jnp.maximum(y + shift_ref[...], 0.0)    # BN scale folded into W2; fp32 VPU math

        if needs_mask:
            # Keep padded pixels out of the fused statistics (and out of downstream layers).
            col = jax.lax.broadcasted_iota(jnp.int32, y.shape, 1) + pl.program_id(1) * tile
            y = jnp.where(col < hw, y, 0.0)

        o_ref[0] = y.astype(o_ref.dtype)

        if fuse_stats:
            sxx_ref[0] += jax.lax.dot_general(y, y, _NT_DIMS,
                                              preferred_element_type=jnp.float32)
            sx_ref[0] += jnp.sum(y, axis=1, keepdims=True)

    return kernel


# --------------------------------------------------------------------------- pallas wrappers
def _gram_pass(x, tile):
    """Per-batch-element Gram of x; batch axis 'parallel' (v7x), HW-tile axis reduction."""
    n, cin, hwp = x.shape
    nt = hwp // tile
    return pl.pallas_call(
        _gram_kernel,
        out_shape=(jax.ShapeDtypeStruct((n, cin, cin), jnp.float32),
                   jax.ShapeDtypeStruct((n, cin, 1), jnp.float32)),
        grid_spec=pltpu.PrefetchScalarGridSpec(
            num_scalar_prefetch=0,
            grid=(n, nt),
            in_specs=[pl.BlockSpec((1, cin, tile), lambda i, t: (i, 0, t))],
            out_specs=(pl.BlockSpec((1, cin, cin), lambda i, t: (i, 0, 0)),
                       pl.BlockSpec((1, cin, 1), lambda i, t: (i, 0, 0))),
        ),
        compiler_params=pltpu.CompilerParams(
            dimension_semantics=("parallel", "arbitrary"),
            vmem_limit_bytes=_VMEM_LIMIT),
    )(x)


def _apply_pass(x, w2, shift, *, hw, hw_pad, tile, out_dtype, fuse_stats):
    n, cin, hwp = x.shape
    cout = w2.shape[0]
    nt = hwp // tile
    kernel = _make_apply_kernel(fuse_stats, hw, tile, hw_pad)

    o_shape = jax.ShapeDtypeStruct((n, cout, hwp), out_dtype)
    o_spec = pl.BlockSpec((1, cout, tile), lambda i, t: (i, 0, t))
    in_specs = [pl.BlockSpec((1, cin, tile), lambda i, t: (i, 0, t)),
                pl.BlockSpec((cout, cin), lambda i, t: (0, 0)),
                pl.BlockSpec((cout, 1), lambda i, t: (0, 0))]

    if fuse_stats:
        out_shape = (o_shape,
                     jax.ShapeDtypeStruct((n, cout, cout), jnp.float32),
                     jax.ShapeDtypeStruct((n, cout, 1), jnp.float32))
        out_specs = (o_spec,
                     pl.BlockSpec((1, cout, cout), lambda i, t: (i, 0, 0)),
                     pl.BlockSpec((1, cout, 1), lambda i, t: (i, 0, 0)))
        sems = ("parallel", "arbitrary")      # Gram accumulators resident over HW tiles
    else:
        out_shape = o_shape
        out_specs = o_spec
        sems = ("parallel", "parallel")

    res = pl.pallas_call(
        kernel,
        out_shape=out_shape,
        grid_spec=pltpu.PrefetchScalarGridSpec(
            num_scalar_prefetch=0,
            grid=(n, nt),
            in_specs=in_specs,
            out_specs=out_specs),
        compiler_params=pltpu.CompilerParams(
            dimension_semantics=sems,
            vmem_limit_bytes=_VMEM_LIMIT),
    )(x, w2, shift)

    if fuse_stats:
        return res
    return res, None, None


def _fold_bn(sxx_n, sx_n, count, w, gamma, beta, eps):
    """Fold train-mode BN into (W*scale, shift) from the layer-input Gram statistics."""
    sxx = jnp.sum(sxx_n, axis=0)                         # (Cin, Cin)
    sx = jnp.sum(sx_n, axis=0)[:, 0]                     # (Cin,)
    wf = w.astype(jnp.float32)
    hi = jax.lax.Precision.HIGHEST
    sy = jnp.dot(wf, sx, precision=hi)                   # sum_pixels(y) per channel
    syy = jnp.sum(jnp.dot(wf, sxx, precision=hi) * wf, axis=1)   # sum_pixels(y^2) per channel
    mean = sy / count
    var = syy / count - mean * mean                      # biased variance (PyTorch BN fwd)
    scale = gamma * jax.lax.rsqrt(var + eps)
    shift = beta - mean * scale                          # conv bias (zeros) cancels w/ mean sub
    w2 = (wf * scale[:, None]).astype(jnp.bfloat16)      # BN scale folded into the weight
    return w2, shift.reshape(-1, 1).astype(jnp.float32)


def fc_forward(x_nchw, params):
    """FC.forward: chain of (1x1 conv + train-mode BatchNorm2d + ReLU) layers."""
    n, c, h, w_sp = x_nchw.shape
    hw = h * w_sp
    hw_pad = _round_up(hw, 128)                          # lane-dense, unmasked stores
    x = x_nchw.reshape(n, c, hw)
    if hw_pad != hw:
        x = jnp.pad(x, ((0, 0), (0, 0), (0, hw_pad - hw)))

    count = jnp.float32(n * hw)                          # true pixel count (pads excluded)

    # Layer-1 input Gram via a dedicated reduction pass; later layers get their input
    # Gram fused into the previous layer's apply pass.
    t_gram = _pick_hw_tile(hw_pad, 2 * c * x.dtype.itemsize + 4 * c)
    sxx_n, sx_n = _gram_pass(x, t_gram)

    n_layers = len(params)
    for i, p in enumerate(params):
        last = i == n_layers - 1
        cout, cin = p["w"].shape
        w2, shift = _fold_bn(sxx_n, sx_n, count, p["w"], p["gamma"], p["beta"], _BN_EPS)
        out_dtype = jnp.float32 if last else jnp.bfloat16
        per_lane = (2 * (cin * x.dtype.itemsize + cout * jnp.dtype(out_dtype).itemsize)
                    + 8 * cout)                          # dbl-buffered tiles + f32 y temp
        tile = _pick_hw_tile(hw_pad, per_lane)
        x, sxx_n, sx_n = _apply_pass(
            x, w2, shift, hw=hw, hw_pad=hw_pad, tile=tile,
            out_dtype=out_dtype, fuse_stats=not last)

    # TODO(synk): BatchNorm2d running_mean/running_var buffers are not updated
    # (only the training-mode forward output is reproduced).
    out = x[:, :, :hw] if hw_pad != hw else x
    return out.reshape(n, out.shape[1], h, w_sp)


# --------------------------------------------------------------------------- params / reference
def xavier_uniform(key, cout, cin):
    """Match torch.nn.init.xavier_uniform_ for a (Cout, Cin, 1, 1) conv weight."""
    bound = math.sqrt(6.0 / (cin + cout))
    return jax.random.uniform(key, (cout, cin), jnp.float32, -bound, bound)


def make_fc_params(key, input_dims, units):
    params = []
    for cin, cout in zip(input_dims, units):
        key, sub = jax.random.split(key)
        params.append(dict(
            w=xavier_uniform(sub, cout, cin),            # == conv.weight[:, :, 0, 0]
            gamma=jnp.ones((cout,), jnp.float32),        # BN weight
            beta=jnp.zeros((cout,), jnp.float32),        # BN bias
        ))
    return params


def fc_reference(x_nchw, params, eps=_BN_EPS):
    """Pure-JAX fp32 reference of the PyTorch forward (for a sanity check)."""
    x = x_nchw
    for p in params:
        y = jnp.einsum("nchw,oc->nohw", x, p["w"],
                       precision=jax.lax.Precision.HIGHEST)
        mean = jnp.mean(y, axis=(0, 2, 3), keepdims=True)
        var = jnp.mean((y - mean) ** 2, axis=(0, 2, 3), keepdims=True)
        y = (y - mean) * jax.lax.rsqrt(var + eps)
        y = y * p["gamma"].reshape(1, -1, 1, 1) + p["beta"].reshape(1, -1, 1, 1)
        x = jnp.maximum(y, 0.0)
    return x


# --------------------------------------------------------------------------- main
if __name__ == "__main__":
    key = jax.random.PRNGKey(0)
    kx, kp = jax.random.split(key)

    # FC(input_dims=[4, 32], units=[32, 16], activations=[relu, relu]):
    # two 1x1-conv layers -> exercises the fused-stats bf16 path and the final fp32 layer.
    N, C, H, W = 2, 4, 16, 16
    INPUT_DIMS = [C, 32]
    UNITS = [32, 16]

    x = jax.random.normal(kx, (N, C, H, W), jnp.float32)
    params = make_fc_params(kp, input_dims=INPUT_DIMS, units=UNITS)

    out = jax.jit(fc_forward)(x, params)
    out = jax.block_until_ready(out)
    assert out.shape == (N, UNITS[-1], H, W), out.shape

    ref = fc_reference(x, params)
    err = float(jnp.max(jnp.abs(out - ref)))
    assert err < 0.1, f"max abs err vs reference: {err}"

    print("KERNEL_OK")
</pallas_src>

<mosaic_0001>
module attributes {stable_mosaic.version = 11 : i64} {
  func.func @_gram_kernel(%arg0: i32, %arg1: i32, %arg2: memref<1x4x256xf32, #tpu.memory_space<vmem>>, %arg3: memref<1x4x4xf32, #tpu.memory_space<vmem>>, %arg4: memref<1x4x1xf32, #tpu.memory_space<vmem>>) attributes {dimension_semantics = [#tpu.dimension_semantics<parallel>, #tpu.dimension_semantics<arbitrary>], iteration_bounds = array<i64: 2, 1>, scalar_prefetch = 0 : i64, scratch_operands = 0 : i64, tpu.core_type = #tpu.core_type<tc>, window_params = [{transform_indices = @transform_0, window_bounds = array<i64: 1, 4, 256>}, {transform_indices = @transform_1, window_bounds = array<i64: 1, 4, 4>}, {transform_indices = @transform_2, window_bounds = array<i64: 1, 4, 1>}]} {
    %c0_i32 = arith.constant 0 : i32
    %0 = arith.cmpi eq, %arg1, %c0_i32 : i32
    %1 = arith.extui %0 : i1 to i32
    %c0_i32_0 = arith.constant 0 : i32
    %2 = arith.cmpi ne, %1, %c0_i32_0 : i32
    scf.if %2 {
      %cst_16 = arith.constant 0.000000e+00 : f32
      %20 = vector.broadcast %cst_16 : f32 to vector<1x4x4xf32>
      %c0_17 = arith.constant 0 : index
      %c0_18 = arith.constant 0 : index
      %c0_19 = arith.constant 0 : index
      %21 = vector.load %arg3[%c0_17, %c0_18, %c0_19] : memref<1x4x4xf32, #tpu.memory_space<vmem>>, vector<1x4x4xf32>
      tpu.vector_store %arg3[%c0_17, %c0_18, %c0_19], %20 {strides = array<i32>} : memref<1x4x4xf32, #tpu.memory_space<vmem>>, vector<1x4x4xf32>,
      %cst_20 = arith.constant 0.000000e+00 : f32
      %22 = vector.broadcast %cst_20 : f32 to vector<1x4x1xf32>
      %c0_21 = arith.constant 0 : index
      %c0_22 = arith.constant 0 : index
      %c0_23 = arith.constant 0 : index
      %23 = vector.load %arg4[%c0_21, %c0_22, %c0_23] : memref<1x4x1xf32, #tpu.memory_space<vmem>>, vector<1x4x1xf32>
      tpu.vector_store %arg4[%c0_21, %c0_22, %c0_23], %22 {strides = array<i32>} : memref<1x4x1xf32, #tpu.memory_space<vmem>>, vector<1x4x1xf32>,
    } else {
    }
    %c0 = arith.constant 0 : index
    %c0_1 = arith.constant 0 : index
    %c0_2 = arith.constant 0 : index
    %3 = vector.load %arg2[%c0, %c0_1, %c0_2] : memref<1x4x256xf32, #tpu.memory_space<vmem>>, vector<1x4x256xf32>
    %4 = vector.shape_cast %3 : vector<1x4x256xf32> to vector<4x256xf32>
    %c0_3 = arith.constant 0 : index
    %c0_4 = arith.constant 0 : index
    %c0_5 = arith.constant 0 : index
    %5 = vector.load %arg3[%c0_3, %c0_4, %c0_5] : memref<1x4x4xf32, #tpu.memory_space<vmem>>, vector<1x4x4xf32>
    %6 = vector.shape_cast %5 : vector<1x4x4xf32> to vector<4x4xf32>
    %cst = arith.constant dense<0.000000e+00> : vector<4x4xf32>
    %7 = tpu.matmul %4, %4, %cst {dimension_numbers = #tpu.dot_dimension_numbers<[1], [1], [0], [0], [0, 0, 1, 0], [], []>} : vector<4x256xf32>, vector<4x256xf32>, vector<4x4xf32> -> vector<4x4xf32>
    %8 = arith.addf %6, %7 : vector<4x4xf32>
    %c0_6 = arith.constant 0 : index
    %c0_7 = arith.constant 0 : index
    %c0_8 = arith.constant 0 : index
    %9 = vector.load %arg3[%c0_6, %c0_7, %c0_8] : memref<1x4x4xf32, #tpu.memory_space<vmem>>, vector<1x4x4xf32>
    %10 = vector.shape_cast %9 : vector<1x4x4xf32> to vector<4x4xf32>
    %11 = vector.shape_cast %8 : vector<4x4xf32> to vector<1x4x4xf32>
    tpu.vector_store %arg3[%c0_6, %c0_7, %c0_8], %11 {strides = array<i32>} : memref<1x4x4xf32, #tpu.memory_space<vmem>>, vector<1x4x4xf32>,
    %c0_9 = arith.constant 0 : index
    %c0_10 = arith.constant 0 : index
    %c0_11 = arith.constant 0 : index
    %12 = vector.load %arg4[%c0_9, %c0_10, %c0_11] : memref<1x4x1xf32, #tpu.memory_space<vmem>>, vector<1x4x1xf32>
    %13 = vector.shape_cast %12 : vector<1x4x1xf32> to vector<4x1xf32>
    %cst_12 = arith.constant dense<0.000000e+00> : vector<4xf32>
    %14 = vector.multi_reduction <add>, %4, %cst_12 [1] : vector<4x256xf32> to vector<4xf32>
    %15 = vector.shape_cast %14 : vector<4xf32> to vector<4x1xf32>
    %16 = arith.addf %13, %15 : vector<4x1xf32>
    %c0_13 = arith.constant 0 : index
    %c0_14 = arith.constant 0 : index
    %c0_15 = arith.constant 0 : index
    %17 = vector.load %arg4[%c0_13, %c0_14, %c0_15] : memref<1x4x1xf32, #tpu.memory_space<vmem>>, vector<1x4x1xf32>
    %18 = vector.shape_cast %17 : vector<1x4x1xf32> to vector<4x1xf32>
    %19 = vector.shape_cast %16 : vector<4x1xf32> to vector<1x4x1xf32>
    tpu.vector_store %arg4[%c0_13, %c0_14, %c0_15], %19 {strides = array<i32>} : memref<1x4x1xf32, #tpu.memory_space<vmem>>, vector<1x4x1xf32>,
    return
  }
  func.func @transform_0(%arg0: i32, %arg1: i32) -> (i32, i32, i32) {
    %c0_i32 = arith.constant 0 : i32
    %c0_i32_0 = arith.constant 0 : i32
    return %arg0, %c0_i32, %arg1 : i32, i32, i32
  }
  func.func @transform_1(%arg0: i32, %arg1: i32) -> (i32, i32, i32) {
    %c0_i32 = arith.constant 0 : i32
    %c0_i32_0 = arith.constant 0 : i32
    %c0_i32_1 = arith.constant 0 : i32
    return %arg0, %c0_i32, %c0_i32_0 : i32, i32, i32
  }
  func.func @transform_2(%arg0: i32, %arg1: i32) -> (i32, i32, i32) {
    %c0_i32 = arith.constant 0 : i32
    %c0_i32_0 = arith.constant 0 : i32
    %c0_i32_1 = arith.constant 0 : i32
    return %arg0, %c0_i32, %c0_i32_0 : i32, i32, i32
  }
}

module attributes {stable_mosaic.version = 11 : i64} {
  func.func @kernel(%arg0: i32, %arg1: i32, %arg2: memref<1x4x256xf32, #tpu.memory_space<vmem>>, %arg3: memref<32x4xbf16, #tpu.memory_space<vmem>>, %arg4: memref<32x1xf32, #tpu.memory_space<vmem>>, %arg5: memref<1x32x256xbf16, #tpu.memory_space<vmem>>, %arg6: memref<1x32x32xf32, #tpu.memory_space<vmem>>, %arg7: memref<1x32x1xf32, #tpu.memory_space<vmem>>) attributes {dimension_semantics = [#tpu.dimension_semantics<parallel>, #tpu.dimension_semantics<arbitrary>], iteration_bounds = array<i64: 2, 1>, scalar_prefetch = 0 : i64, scratch_operands = 0 : i64, tpu.core_type = #tpu.core_type<tc>, window_params = [{transform_indices = @transform_0, window_bounds = array<i64: 1, 4, 256>}, {pipeline_mode = #tpu.pipeline_mode<synchronous>, transform_indices = @transform_1, window_bounds = array<i64: 32, 4>}, {pipeline_mode = #tpu.pipeline_mode<synchronous>, transform_indices = @transform_2, window_bounds = array<i64: 32, 1>}, {transform_indices = @transform_3, window_bounds = array<i64: 1, 32, 256>}, {transform_indices = @transform_4, window_bounds = array<i64: 1, 32, 32>}, {transform_indices = @transform_5, window_bounds = array<i64: 1, 32, 1>}]} {
    %c0_i32 = arith.constant 0 : i32
    %0 = arith.cmpi eq, %arg1, %c0_i32 : i32
    %1 = arith.extui %0 : i1 to i32
    %c0_i32_0 = arith.constant 0 : i32
    %2 = arith.cmpi ne, %1, %c0_i32_0 : i32
    scf.if %2 {
      %cst_25 = arith.constant 0.000000e+00 : f32
      %32 = vector.broadcast %cst_25 : f32 to vector<1x32x32xf32>
      %c0_26 = arith.constant 0 : index
      %c0_27 = arith.constant 0 : index
      %c0_28 = arith.constant 0 : index
      %33 = vector.load %arg6[%c0_26, %c0_27, %c0_28] : memref<1x32x32xf32, #tpu.memory_space<vmem>>, vector<1x32x32xf32>
      tpu.vector_store %arg6[%c0_26, %c0_27, %c0_28], %32 {strides = array<i32>} : memref<1x32x32xf32, #tpu.memory_space<vmem>>, vector<1x32x32xf32>,
      %cst_29 = arith.constant 0.000000e+00 : f32
      %34 = vector.broadcast %cst_29 : f32 to vector<1x32x1xf32>
      %c0_30 = arith.constant 0 : index
      %c0_31 = arith.constant 0 : index
      %c0_32 = arith.constant 0 : index
      %35 = vector.load %arg7[%c0_30, %c0_31, %c0_32] : memref<1x32x1xf32, #tpu.memory_space<vmem>>, vector<1x32x1xf32>
      tpu.vector_store %arg7[%c0_30, %c0_31, %c0_32], %34 {strides = array<i32>} : memref<1x32x1xf32, #tpu.memory_space<vmem>>, vector<1x32x1xf32>,
    } else {
    }
    %c0 = arith.constant 0 : index
    %c0_1 = arith.constant 0 : index
    %c0_2 = arith.constant 0 : index
    %3 = vector.load %arg2[%c0, %c0_1, %c0_2] : memref<1x4x256xf32, #tpu.memory_space<vmem>>, vector<1x4x256xf32>
    %4 = vector.shape_cast %3 : vector<1x4x256xf32> to vector<4x256xf32>
    %5 = arith.truncf %4 : vector<4x256xf32> to vector<4x256xbf16>
    %c0_3 = arith.constant 0 : index
    %c0_4 = arith.constant 0 : index
    %6 = vector.load %arg3[%c0_3, %c0_4] : memref<32x4xbf16, #tpu.memory_space<vmem>>, vector<32x4xbf16>
    %cst = arith.constant dense<0.000000e+00> : vector<32x256xf32>
    %7 = tpu.matmul %6, %5, %cst {dimension_numbers = #tpu.dot_dimension_numbers<[1], [0], [0], [1], [0, 0, 1, 1], [], []>} : vector<32x4xbf16>, vector<4x256xbf16>, vector<32x256xf32> -> vector<32x256xf32>
    %c0_5 = arith.constant 0 : index
    %c0_6 = arith.constant 0 : index
    %8 = vector.load %arg4[%c0_5, %c0_6] : memref<32x1xf32, #tpu.memory_space<vmem>>, vector<32x1xf32>
    %9 = vector.broadcast %8 : vector<32x1xf32> to vector<32x256xf32>
    %10 = arith.addf %7, %9 : vector<32x256xf32>
    %cst_7 = arith.constant 0.000000e+00 : f32
    %11 = vector.broadcast %cst_7 : f32 to vector<32x256xf32>
    %12 = arith.maximumf %10, %11 : vector<32x256xf32>
    %13 = arith.truncf %12 : vector<32x256xf32> to vector<32x256xbf16>
    %c0_8 = arith.constant 0 : index
    %c0_9 = arith.constant 0 : index
    %c0_10 = arith.constant 0 : index
    %14 = vector.load %arg5[%c0_8, %c0_9, %c0_10] : memref<1x32x256xbf16, #tpu.memory_space<vmem>>, vector<1x32x256xbf16>
    %15 = vector.shape_cast %14 : vector<1x32x256xbf16> to vector<32x256xbf16>
    %16 = vector.shape_cast %13 : vector<32x256xbf16> to vector<1x32x256xbf16>
    tpu.vector_store %arg5[%c0_8, %c0_9, %c0_10], %16 {strides = array<i32>} : memref<1x32x256xbf16, #tpu.memory_space<vmem>>, vector<1x32x256xbf16>,
    %c0_11 = arith.constant 0 : index
    %c0_12 = arith.constant 0 : index
    %c0_13 = arith.constant 0 : index
    %17 = vector.load %arg6[%c0_11, %c0_12, %c0_13] : memref<1x32x32xf32, #tpu.memory_space<vmem>>, vector<1x32x32xf32>
    %18 = vector.shape_cast %17 : vector<1x32x32xf32> to vector<32x32xf32>
    %cst_14 = arith.constant dense<0.000000e+00> : vector<32x32xf32>
    %19 = tpu.matmul %12, %12, %cst_14 {dimension_numbers = #tpu.dot_dimension_numbers<[1], [1], [0], [0], [0, 0, 1, 0], [], []>} : vector<32x256xf32>, vector<32x256xf32>, vector<32x32xf32> -> vector<32x32xf32>
    %20 = arith.addf %18, %19 : vector<32x32xf32>
    %c0_15 = arith.constant 0 : index
    %c0_16 = arith.constant 0 : index
    %c0_17 = arith.constant 0 : index
    %21 = vector.load %arg6[%c0_15, %c0_16, %c0_17] : memref<1x32x32xf32, #tpu.memory_space<vmem>>, vector<1x32x32xf32>
    %22 = vector.shape_cast %21 : vector<1x32x32xf32> to vector<32x32xf32>
    %23 = vector.shape_cast %20 : vector<32x32xf32> to vector<1x32x32xf32>
    tpu.vector_store %arg6[%c0_15, %c0_16, %c0_17], %23 {strides = array<i32>} : memref<1x32x32xf32, #tpu.memory_space<vmem>>, vector<1x32x32xf32>,
    %c0_18 = arith.constant 0 : index
    %c0_19 = arith.constant 0 : index
    %c0_20 = arith.constant 0 : index
    %24 = vector.load %arg7[%c0_18, %c0_19, %c0_20] : memref<1x32x1xf32, #tpu.memory_space<vmem>>, vector<1x32x1xf32>
    %25 = vector.shape_cast %24 : vector<1x32x1xf32> to vector<32x1xf32>
    %cst_21 = arith.constant dense<0.000000e+00> : vector<32xf32>
    %26 = vector.multi_reduction <add>, %12, %cst_21 [1] : vector<32x256xf32> to vector<32xf32>
    %27 = vector.shape_cast %26 : vector<32xf32> to vector<32x1xf32>
    %28 = arith.addf %25, %27 : vector<32x1xf32>
    %c0_22 = arith.constant 0 : index
    %c0_23 = arith.constant 0 : index
    %c0_24 = arith.constant 0 : index
    %29 = vector.load %arg7[%c0_22, %c0_23, %c0_24] : memref<1x32x1xf32, #tpu.memory_space<vmem>>, vector<1x32x1xf32>
    %30 = vector.shape_cast %29 : vector<1x32x1xf32> to vector<32x1xf32>
    %31 = vector.shape_cast %28 : vector<32x1xf32> to vector<1x32x1xf32>
    tpu.vector_store %arg7[%c0_22, %c0_23, %c0_24], %31 {strides = array<i32>} : memref<1x32x1xf32, #tpu.memory_space<vmem>>, vector<1x32x1xf32>,
    return
  }
  func.func @transform_0(%arg0: i32, %arg1: i32) -> (i32, i32, i32) {
    %c0_i32 = arith.constant 0 : i32
    %c0_i32_0 = arith.constant 0 : i32
    return %arg0, %c0_i32, %arg1 : i32, i32, i32
  }
  func.func @transform_1(%arg0: i32, %arg1: i32) -> (i32, i32) {
    %c0_i32 = arith.constant 0 : i32
    %c0_i32_0 = arith.constant 0 : i32
    %c0_i32_1 = arith.constant 0 : i32
    return %c0_i32, %c0_i32_0 : i32, i32
  }
  func.func @transform_2(%arg0: i32, %arg1: i32) -> (i32, i32) {
    %c0_i32 = arith.constant 0 : i32
    %c0_i32_0 = arith.constant 0 : i32
    %c0_i32_1 = arith.constant 0 : i32
    return %c0_i32, %c0_i32_0 : i32, i32
  }
  func.func @transform_3(%arg0: i32, %arg1: i32) -> (i32, i32, i32) {
    %c0_i32 = arith.constant 0 : i32
    %c0_i32_0 = arith.constant 0 : i32
    return %arg0, %c0_i32, %arg1 : i32, i32, i32
  }
  func.func @transform_4(%arg0: i32, %arg1: i32) -> (i32, i32, i32) {
    %c0_i32 = arith.constant 0 : i32
    %c0_i32_0 = arith.constant 0 : i32
    %c0_i32_1 = arith.constant 0 : i32
    return %arg0, %c0_i32, %c0_i32_0 : i32, i32, i32
  }
  func.func @transform_5(%arg0: i32, %arg1: i32) -> (i32, i32, i32) {
    %c0_i32 = arith.constant 0 : i32
    %c0_i32_0 = arith.constant 0 : i32
    %c0_i32_1 = arith.constant 0 : i32
    return %arg0, %c0_i32, %c0_i32_0 : i32, i32, i32
  }
}

module attributes {stable_mosaic.version = 11 : i64} {
  func.func @kernel(%arg0: i32, %arg1: i32, %arg2: memref<1x32x256xbf16, #tpu.memory_space<vmem>>, %arg3: memref<16x32xbf16, #tpu.memory_space<vmem>>, %arg4: memref<16x1xf32, #tpu.memory_space<vmem>>, %arg5: memref<1x16x256xf32, #tpu.memory_space<vmem>>) attributes {dimension_semantics = [#tpu.dimension_semantics<parallel>, #tpu.dimension_semantics<parallel>], iteration_bounds = array<i64: 2, 1>, scalar_prefetch = 0 : i64, scratch_operands = 0 : i64, tpu.core_type = #tpu.core_type<tc>, window_params = [{transform_indices = @transform_0, window_bounds = array<i64: 1, 32, 256>}, {pipeline_mode = #tpu.pipeline_mode<synchronous>, transform_indices = @transform_1, window_bounds = array<i64: 16, 32>}, {pipeline_mode = #tpu.pipeline_mode<synchronous>, transform_indices = @transform_2, window_bounds = array<i64: 16, 1>}, {transform_indices = @transform_3, window_bounds = array<i64: 1, 16, 256>}]} {
    %c0 = arith.constant 0 : index
    %c0_0 = arith.constant 0 : index
    %c0_1 = arith.constant 0 : index
    %0 = vector.load %arg2[%c0, %c0_0, %c0_1] : memref<1x32x256xbf16, #tpu.memory_space<vmem>>, vector<1x32x256xbf16>
    %1 = vector.shape_cast %0 : vector<1x32x256xbf16> to vector<32x256xbf16>
    %c0_2 = arith.constant 0 : index
    %c0_3 = arith.constant 0 : index
    %2 = vector.load %arg3[%c0_2, %c0_3] : memref<16x32xbf16, #tpu.memory_space<vmem>>, vector<16x32xbf16>
    %cst = arith.constant dense<0.000000e+00> : vector<16x256xf32>
    %3 = tpu.matmul %2, %1, %cst {dimension_numbers = #tpu.dot_dimension_numbers<[1], [0], [0], [1], [0, 0, 1, 1], [], []>} : vector<16x32xbf16>, vector<32x256xbf16>, vector<16x256xf32> -> vector<16x256xf32>
    %c0_4 = arith.constant 0 : index
    %c0_5 = arith.constant 0 : index
    %4 = vector.load %arg4[%c0_4, %c0_5] : memref<16x1xf32, #tpu.memory_space<vmem>>, vector<16x1xf32>
    %5 = vector.broadcast %4 : vector<16x1xf32> to vector<16x256xf32>
    %6 = arith.addf %3, %5 : vector<16x256xf32>
    %cst_6 = arith.constant 0.000000e+00 : f32
    %7 = vector.broadcast %cst_6 : f32 to vector<16x256xf32>
    %8 = arith.maximumf %6, %7 : vector<16x256xf32>
    %c0_7 = arith.constant 0 : index
    %c0_8 = arith.constant 0 : index
    %c0_9 = arith.constant 0 : index
    %9 = vector.load %arg5[%c0_7, %c0_8, %c0_9] : memref<1x16x256xf32, #tpu.memory_space<vmem>>, vector<1x16x256xf32>
    %10 = vector.shape_cast %9 : vector<1x16x256xf32> to vector<16x256xf32>
    %11 = vector.shape_cast %8 : vector<16x256xf32> to vector<1x16x256xf32>
    tpu.vector_store %arg5[%c0_7, %c0_8, %c0_9], %11 {strides = array<i32>} : memref<1x16x256xf32, #tpu.memory_space<vmem>>, vector<1x16x256xf32>,
    return
  }
  func.func @transform_0(%arg0: i32, %arg1: i32) -> (i32, i32, i32) {
    %c0_i32 = arith.constant 0 : i32
    %c0_i32_0 = arith.constant 0 : i32
    return %arg0, %c0_i32, %arg1 : i32, i32, i32
  }
  func.func @transform_1(%arg0: i32, %arg1: i32) -> (i32, i32) {
    %c0_i32 = arith.constant 0 : i32
    %c0_i32_0 = arith.constant 0 : i32
    %c0_i32_1 = arith.constant 0 : i32
    return %c0_i32, %c0_i32_0 : i32, i32
  }
  func.func @transform_2(%arg0: i32, %arg1: i32) -> (i32, i32) {
    %c0_i32 = arith.constant 0 : i32
    %c0_i32_0 = arith.constant 0 : i32
    %c0_i32_1 = arith.constant 0 : i32
    return %c0_i32, %c0_i32_0 : i32, i32
  }
  func.func @transform_3(%arg0: i32, %arg1: i32) -> (i32, i32, i32) {
    %c0_i32 = arith.constant 0 : i32
    %c0_i32_0 = arith.constant 0 : i32
    return %arg0, %c0_i32, %arg1 : i32, i32, i32
  }
}

</mosaic_0001>

<llo_original>
// kernel: fc_forward.3
$region0: #{fc_forward.3}
  #allocation0 [shape = 'u32[]', space=smem, size = 0x4, offset = 0x4, fixed_abs, tag = 'smem constant byte address 0x4 - core index']
  #allocation1 [shape = 'u32[144,128]{1,0:T(1,128)}', space=vmem, size = 0x12000, scoped, tag = 'internal scratch']
  %s0 = inlined_call_operand.vmem [shape: f32[2,4,256], index: 0, kind: input, shape index: {}]
  %s1 = inlined_call_operand.vmem [shape: f32[2,4,4], index: 1, kind: output, shape index: {0}]
  %s2 = inlined_call_operand.vmem [shape: f32[2,4,1], index: 2, kind: output, shape index: {1}]
  %3 = xla_tuple %s1, %s2
  %s4 = sld [smem:[#allocation0]]
  $region49: #{fc_forward.3} parent=0
    _
  %s6 = ssub.s32 1, %s4
  %s7 = scalar_select 0, %s6, %s4
  loop: start=0, step=1, limit=4
  $region2: #{fc_forward.3} parent=0 // loop_pre_header
    _
  $region3: #{fc_forward.3} parent=0 // loop_header
    %s9 = sphi 0, %s13
    %p10 = scmp.ge.s32.totalorder %s9, 4
    %s16 = sphi 0, %s28
    %s17 = sphi 0, %s24
    %s18 = sphi 0, %s16
    %s19 = sphi 0, %s17
    %s20 = sphi 0, %s18
    %s21 = sphi 0, %s19
    %s33 = sphi 0, %s35
    %s36 = sphi 0, %s33
    %s37 = sphi 0, %s36
    %s53 = sphi 0, %s37
    %s59 = sphi 0, %s61
    %s62 = sphi 0, %s59
    %s63 = sphi 0, %s62
    %s79 = sphi 0, %s63
    %s85 = sphi 0, %s87
    %s88 = sphi 0, %s85
    %s89 = sphi 0, %s88
    %s105 = sphi 0, %s89
  $region4: #{fc_forward.3} parent=0 // loop_header_branch
    %12 = sbr.rel (%p10) target = $region8
  $region5: #{fc_forward.3} parent=0 // loop_body
    %s14 = ssub.s32 %s9, 1
    %s15 = ssub.s32 %s9, 2
    %s22 = sadd.s32 1, %s17
    %p23 = scmp.ge.s32.totalorder %s22, 1
    %s24 = scalar_select %p23, 0, %s22
    %s25 = sadd.s32 1, %s16
    %s26 = scalar_select %p23, %s25, %s16
    %p27 = scmp.ge.s32.totalorder %s26, 2
    %s28 = scalar_select %p27, 0, %s26
    %s29 = ssub.s32 %s16, %s28
    %s30 = ssub.s32 %s17, %s24
    %s31 = sor.u32 %s29, %s30
    %p32 = scmp.eq.s32.totalorder %s31, 0
    %s34 = sadd.s32 %s33, 1
    %s35 = scalar_select %p32, %s33, %s34
    %p38 = pneg %p32
    %p39 = scmp.eq.s32.totalorder %s9, 1
    %p40 = por %p38, %p39
    %p41 = scmp.ne.s32.totalorder %s33, %s36
    %p42 = scmp.eq.s32.totalorder %s9, 0
    %p43 = por %p41, %p42
    %p44 = scmp.ne.s32.totalorder %s33, %s36
    %p45 = scmp.eq.s32.totalorder %s14, 1
    %p46 = por %p44, %p45
    %p47 = scmp.ne.s32.totalorder %s36, %s37
    %p48 = scmp.eq.s32.totalorder %s14, 0
    %p49 = por %p47, %p48
    %p50 = scmp.ne.s32.totalorder %s36, %s37
    %p51 = scmp.eq.s32.totalorder %s15, 1
    %p52 = por %p50, %p51
    %p54 = scmp.ne.s32.totalorder %s37, %s53
    %p55 = scmp.eq.s32.totalorder %s15, 0
    %p56 = por %p54, %p55
    %s57 = ssub.s32 %s16, %s28
    %p58 = scmp.eq.s32.totalorder %s57, 0
    %s60 = sadd.s32 %s59, 1
    %s61 = scalar_select %p58, %s59, %s60
    %p64 = pneg %p58
    %p65 = scmp.eq.s32.totalorder %s9, 1
    %p66 = por %p64, %p65
    %p67 = scmp.ne.s32.totalorder %s59, %s62
    %p68 = scmp.eq.s32.totalorder %s9, 0
    %p69 = por %p67, %p68
    %p70 = scmp.ne.s32.totalorder %s59, %s62
    %p71 = scmp.eq.s32.totalorder %s14, 1
    %p72 = por %p70, %p71
    %p73 = scmp.ne.s32.totalorder %s62, %s63
    %p74 = scmp.eq.s32.totalorder %s14, 0
    %p75 = por %p73, %p74
    %p76 = scmp.ne.s32.totalorder %s62, %s63
    %p77 = scmp.eq.s32.totalorder %s15, 1
    %p78 = por %p76, %p77
    %p80 = scmp.ne.s32.totalorder %s63, %s79
    %p81 = scmp.eq.s32.totalorder %s15, 0
    %p82 = por %p80, %p81
    %s83 = ssub.s32 %s16, %s28
    %p84 = scmp.eq.s32.totalorder %s83, 0
    %s86 = sadd.s32 %s85, 1
    %s87 = scalar_select %p84, %s85, %s86
    %p90 = pneg %p84
    %p91 = scmp.eq.s32.totalorder %s9, 1
    %p92 = por %p90, %p91
    %p93 = scmp.ne.s32.totalorder %s85, %s88
    %p94 = scmp.eq.s32.totalorder %s9, 0
    %p95 = por %p93, %p94
    %p96 = scmp.ne.s32.totalorder %s85, %s88
    %p97 = scmp.eq.s32.totalorder %s14, 1
    %p98 = por %p96, %p97
    %p99 = scmp.ne.s32.totalorder %s88, %s89
    %p100 = scmp.eq.s32.totalorder %s14, 0
    %p101 = por %p99, %p100
    %p102 = scmp.ne.s32.totalorder %s88, %s89
    %p103 = scmp.eq.s32.totalorder %s15, 1
    %p104 = por %p102, %p103
    %p106 = scmp.ne.s32.totalorder %s89, %s105
    %p107 = scmp.eq.s32.totalorder %s15, 0
    %p108 = por %p106, %p107
    %p109 = scmp.le.s32.totalorder 1, %s9
    %p110 = scmp.lt.s32.totalorder %s9, 3
    %p111 = pnand %p109, %p110
    %p112 = pneg %p111
    // Predicated region
    $region9: #{fc_forward.3} parent=5 // pred_check
      _
    $region10: #{fc_forward.3} parent=5 // pred_check_branch
      %114 = sbr.rel (%p111) target = $region12
    $region11: #{fc_forward.3} parent=5 // pred_region
      %s115 = ssub.s32 %s9, 1
    $region12: #{fc_forward.3} parent=5 // pred_fallthru
      _
    %p116 = scmp.lt.s32.totalorder %s9, 2
    // Predicated region
    $region13: #{fc_forward.3} parent=5 // pred_check
      %p117 = pneg %p116
    $region14: #{fc_forward.3} parent=5 // pred_check_branch
      %119 = sbr.rel (%p117) target = $region16
    $region15: #{fc_forward.3} parent=5 // pred_region
      // Predicated region
      $region17: #{fc_forward.3} parent=15 // pred_check
        %p120 = pneg %p43
      $region18: #{fc_forward.3} parent=15 // pred_check_branch
        %122 = sbr.rel (%p120) target = $region20
      $region19: #{fc_forward.3} parent=15 // pred_region
        %s123 = smul.u32 2, %s17
        %p124 = scmp.lt.s32.totalorder %s16, 1
        %s125 = scalar_select %p124, %s16, 1
        %p126 = scmp.lt.s32.totalorder %s123, 1
        %s127 = scalar_select %p126, %s123, 1
        %s128 = smul.addr %s125, 2
        %s129 = sadd.s32 %s127, %s128
        %s130 = smul.addr %s129, 4
        %s131 = scalar_lea.vmem %s0, %s130
        %s132 = smul.u32 2, %s17
      $region20: #{fc_forward.3} parent=15 // pred_fallthru
        _
    $region16: #{fc_forward.3} parent=5 // pred_fallthru
      _
    %p133 = scmp.le.s32.totalorder 1, %s9
    %p134 = scmp.lt.s32.totalorder %s9, 3
    %p135 = pnand %p133, %p134
    %p136 = pneg %p135
    // Predicated region
    $region21: #{fc_forward.3} parent=5 // pred_check
      _
    $region22: #{fc_forward.3} parent=5 // pred_check_branch
      %138 = sbr.rel (%p135) target = $region24
    $region23: #{fc_forward.3} parent=5 // pred_region
      %s139 = ssub.s32 %s9, 1
      %s140 = smul.u32 2, %s19
      %p141 = scmp.lt.s32.totalorder %s18, 1
      %s142 = scalar_select %p141, %s18, 1
      %p143 = scmp.lt.s32.totalorder %s140, 1
      %s144 = scalar_select %p143, %s140, 1
      %s145 = smul.addr %s142, 2
      %s146 = sadd.s32 %s144, %s145
      %s147 = smul.addr %s146, 4
      %s148 = scalar_lea.vmem %s0, %s147
      %p149 = pneg %p49
      %p150 = pneg %p46
      %p151 = pneg %p75
      %p152 = pneg %p72
      %p153 = scmp.lt.s32.totalorder %s18, 1
      %s154 = scalar_select %p153, %s18, 1
      %s155 = smul.addr %s154, 4
      %s156 = scalar_lea.vmem %s1, %s155
      %p157 = pneg %p101
      %p158 = pneg %p98
      %p159 = scmp.lt.s32.totalorder %s18, 1
      %s160 = scalar_select %p159, %s18, 1
      %s161 = smul.addr %s160, 4
      %s162 = scalar_lea.vmem %s2, %s161
      %s163 = smul.u32 2, %s19
      %p164 = scmp.lt.s32.totalorder %s18, 1
      %s165 = scalar_select %p164, %s18, 1
      %p166 = scmp.lt.s32.totalorder %s163, 1
      %s167 = scalar_select %p166, %s163, 1
      %s168 = smul.addr %s165, 2
      %s169 = sadd.s32 %s167, %s168
      %s170 = smul.addr %s169, 4
      %s171 = scalar_lea.vmem %s0, %s170
      %s172 = smul.u32 2, %s19
      %p173 = scmp.lt.s32.totalorder %s18, 1
      %s174 = scalar_select %p173, %s18, 1
      %s175 = smul.addr %s174, 4
      %s176 = scalar_lea.vmem %s1, %s175
      %p177 = scmp.lt.s32.totalorder %s18, 1
      %s178 = scalar_select %p177, %s18, 1
      %s179 = smul.addr %s178, 4
      %s180 = scalar_lea.vmem %s2, %s179
      %p181 = scmp.eq.s32.totalorder %s19, 0
      // Predicated region
      $region25: #{fc_forward.3} parent=23 // pred_check
        %p182 = pneg %p181
      $region26: #{fc_forward.3} parent=23 // pred_check_branch
        %184 = sbr.rel (%p182) target = $region28
      $region27: #{fc_forward.3} parent=23 // pred_region
        %vm185 = vcmask 27648
        %186 = vst.msk [vmem:[%s176] sm:$0xf] %vm185, 0.0
        %vm187 = vcmask 3072
        %188 = vst.msk [vmem:[%s180] sm:$0xf] %vm187, 0.0
      $region28: #{fc_forward.3} parent=23 // pred_fallthru
        _
      %v189 = vld [vmem:[%s171] sm:$0xff]
      %v190 = vld [vmem:[%s176] sm:$0xf]
      %v192 = vcombine.high %v189, %v189
      %194 = vmatprep.subr.mxu0 %v192
      %195 = vmatpush1.xpose.msra.mxu0 %v189
      %196 = vmatprep.subr.mxu0 0.0
      %197 = vmatpush1.xpose.msra.mxu0 0.0
      %198 = vmatprep.subr.mxu0 0.0
      %199 = vmatpush1.xpose.msra.mxu0 0.0
      %200 = vmatprep.subr.mxu0 0.0
      %201 = vmatpush1.xpose.msra.mxu0 0.0
      %202 = vmatprep.subr.mxu0 0.0
      %203 = vmatpush1.xpose.msra.mxu0 0.0
      %204 = vmatprep.subr.mxu0 0.0
      %205 = vmatpush1.xpose.msra.mxu0 0.0
      %206 = vmatprep.subr.mxu0 0.0
      %207 = vmatpush1.xpose.msra.mxu0 0.0
      %208 = vmatprep.subr.mxu0 0.0
      %209 = vmatpush1.xpose.msra.mxu0 0.0
      %210 = vmatprep.subr.mxu0 0.0
      %211 = vmatpush1.xpose.msra.mxu0 0.0
      %212 = vmatprep.subr.mxu0 0.0
      %213 = vmatpush1.xpose.msra.mxu0 0.0
      %214 = vmatprep.subr.mxu0 0.0
      %215 = vmatpush1.xpose.msra.mxu0 0.0
      %216 = vmatprep.subr.mxu0 0.0
      %217 = vmatpush1.xpose.msra.mxu0 0.0
      %218 = vmatprep.subr.mxu0 0.0
      %219 = vmatpush1.xpose.msra.mxu0 0.0
      %220 = vmatprep.subr.mxu0 0.0
      %221 = vmatpush1.xpose.msra.mxu0 0.0
      %222 = vmatprep.subr.mxu0 0.0
      %223 = vmatpush1.xpose.msra.mxu0 0.0
      %224 = vmatprep.subr.mxu0 0.0
      %225 = vmatpush1.xpose.msra.mxu0 0.0
      %226 = vmatprep.subr.mxu0 0.0
      %227 = vmatpush1.xpose.msra.mxu0 0.0
      %228 = vmatprep.subr.mxu0 0.0
      %229 = vmatpush1.xpose.msra.mxu0 0.0
      %230 = vmatprep.subr.mxu0 0.0
      %231 = vmatpush1.xpose.msra.mxu0 0.0
      %232 = vmatprep.subr.mxu0 0.0
      %233 = vmatpush1.xpose.msra.mxu0 0.0
      %234 = vmatprep.subr.mxu0 0.0
      %235 = vmatpush1.xpose.msra.mxu0 0.0
      %236 = vmatprep.subr.mxu0 0.0
      %237 = vmatpush1.xpose.msra.mxu0 0.0
      %238 = vmatprep.subr.mxu0 0.0
      %239 = vmatpush1.xpose.msra.mxu0 0.0
      %240 = vmatprep.subr.mxu0 0.0
      %241 = vmatpush1.xpose.msra.mxu0 0.0
      %242 = vmatprep.subr.mxu0 0.0
      %243 = vmatpush1.xpose.msra.mxu0 0.0
      %244 = vmatprep.subr.mxu0 0.0
      %245 = vmatpush1.xpose.msra.mxu0 0.0
      %246 = vmatprep.subr.mxu0 0.0
      %247 = vmatpush1.xpose.msra.mxu0 0.0
      %248 = vmatprep.subr.mxu0 0.0
      %249 = vmatpush1.xpose.msra.mxu0 0.0
      %250 = vmatprep.subr.mxu0 0.0
      %251 = vmatpush1.xpose.msra.mxu0 0.0
      %252 = vmatprep.subr.mxu0 0.0
      %253 = vmatpush1.xpose.msra.mxu0 0.0
      %254 = vmatprep.subr.mxu0 0.0
      %255 = vmatpush1.xpose.msra.mxu0 0.0
      %256 = vmatprep.subr.mxu0 0.0
      %257 = vmatpush1.xpose.msra.mxu0 0.0
      %258 = vmatprep.mubr.f32.mxu0 %v192
      %259 = vmatmul.mubr.f32.gmra.mrb[0].mxu0 %v189
      %v260 = vpop.f32.mrb[0].mxu0
      %v261 = vadd.f32 0.0, %v260
      %v262 = vpop.f32.mrb[0].mxu0
      %263 = vdwg.mxu0
      %v264 = vadd.f32 %v190, %v261
      %vm265 = vcmask 27648
      %266 = vst.msk [vmem:[%s176] sm:$0xf] %vm265, %v264
      %v267 = vld [vmem:[%s180] sm:$0xf]
      %vm268 = vcmask 1043456
      %v269 = vsel %vm268, %v189, 0.0
      %v270 = vsel %vm268, %v192, 0.0
      %v271 = vadd.f32 %v269, %v270
      %272 = vadd.xlane.f32.xlu0 %v271
      %v273 = vpop.xlane.xlu0 %272
      %v274 = vadd.f32 %v267, %v273
      %vm275 = vcmask 3072
      %276 = vst.msk [vmem:[%s180] sm:$0xf] %vm275, %v274
      %p277 = scmp.lt.s32.totalorder %s18, 1
      %s278 = scalar_select %p277, %s18, 1
      %s279 = smul.addr %s278, 4
      %s280 = scalar_lea.vmem %s1, %s279
      %p281 = scmp.lt.s32.totalorder %s18, 1
      %s282 = scalar_select %p281, %s18, 1
      %s283 = smul.addr %s282, 4
      %s284 = scalar_lea.vmem %s2, %s283
      // Predicated region
      $region29: #{fc_forward.3} parent=23 // pred_check
        %p285 = pneg %p72
      $region30: #{fc_forward.3} parent=23 // pred_check_branch
        %287 = sbr.rel (%p285) target = $region32
      $region31: #{fc_forward.3} parent=23 // pred_region
        _
      $region32: #{fc_forward.3} parent=23 // pred_fallthru
        _
      // Predicated region
      $region33: #{fc_forward.3} parent=23 // pred_check
        %p288 = pneg %p98
      $region34: #{fc_forward.3} parent=23 // pred_check_branch
        %290 = sbr.rel (%p288) target = $region36
      $region35: #{fc_forward.3} parent=23 // pred_region
        _
      $region36: #{fc_forward.3} parent=23 // pred_fallthru
        _
    $region24: #{fc_forward.3} parent=5 // pred_fallthru
      _
    %p291 = scmp.le.s32.totalorder 2, %s9
    // Predicated region
    $region37: #{fc_forward.3} parent=5 // pred_check
      %p292 = pneg %p291
    $region38: #{fc_forward.3} parent=5 // pred_check_branch
      %294 = sbr.rel (%p292) target = $region40
    $region39: #{fc_forward.3} parent=5 // pred_region
      %s295 = ssub.s32 %s9, 2
      // Predicated region
      $region41: #{fc_forward.3} parent=39 // pred_check
        %p296 = pneg %p78
      $region42: #{fc_forward.3} parent=39 // pred_check_branch
        %298 = sbr.rel (%p296) target = $region44
      $region43: #{fc_forward.3} parent=39 // pred_region
        %p299 = scmp.lt.s32.totalorder %s20, 1
        %s300 = scalar_select %p299, %s20, 1
        %s301 = smul.addr %s300, 4
        %s302 = scalar_lea.vmem %s1, %s301
      $region44: #{fc_forward.3} parent=39 // pred_fallthru
        _
      // Predicated region
      $region45: #{fc_forward.3} parent=39 // pred_check
        %p303 = pneg %p104
      $region46: #{fc_forward.3} parent=39 // pred_check_branch
        %305 = sbr.rel (%p303) target = $region48
      $region47: #{fc_forward.3} parent=39 // pred_region
        %p306 = scmp.lt.s32.totalorder %s20, 1
        %s307 = scalar_select %p306, %s20, 1
        %s308 = smul.addr %s307, 4
        %s309 = scalar_lea.vmem %s2, %s308
      $region48: #{fc_forward.3} parent=39 // pred_fallthru
        _
    $region40: #{fc_forward.3} parent=5 // pred_fallthru
      _
  $region6: #{fc_forward.3} parent=0 // loop_footer
    %s13 = sadd.s32 1, %s9
  $region7: #{fc_forward.3} parent=0 // loop_footer_branch
    %8 = sbr.rel target = $region3
  $region8: #{fc_forward.3} parent=0 // loop_exit
    _

// kernel: fc_forward.4
$region0: #{fc_forward.4}
  #allocation0 [shape = 'u32[]', space=smem, size = 0x4, offset = 0x4, fixed_abs, tag = 'smem constant byte address 0x4 - core index']
  #allocation1 [shape = 'u32[144,128]{1,0:T(1,128)}', space=vmem, size = 0x12000, scoped, tag = 'internal scratch']
  %s0 = inlined_call_operand.vmem [shape: f32[2,4,256], index: 0, kind: input, shape index: {}]
  %s1 = inlined_call_operand.vmem [shape: bf16[32,4], index: 1, kind: input, shape index: {}]
  %s2 = inlined_call_operand.vmem [shape: f32[32,1], index: 2, kind: input, shape index: {}]
  %s3 = inlined_call_operand.vmem [shape: bf16[2,32,256], index: 3, kind: output, shape index: {0}]
  %s4 = inlined_call_operand.vmem [shape: f32[2,32,32], index: 4, kind: output, shape index: {1}]
  %s5 = inlined_call_operand.vmem [shape: f32[2,32,1], index: 5, kind: output, shape index: {2}]
  %6 = xla_tuple %s3, %s4, %s5
  %s7 = sld [smem:[#allocation0]]
  $region65: #{fc_forward.4} parent=0
    _
  %s9 = ssub.s32 1, %s7
  %s10 = scalar_select 0, %s9, %s7
  loop: start=0, step=1, limit=4
  $region2: #{fc_forward.4} parent=0 // loop_pre_header
    _
  $region3: #{fc_forward.4} parent=0 // loop_header
    %s12 = sphi 0, %s16
    %p13 = scmp.ge.s32.totalorder %s12, 4
    %s19 = sphi 0, %s31
    %s20 = sphi 0, %s27
    %s21 = sphi 0, %s19
    %s22 = sphi 0, %s20
    %s23 = sphi 0, %s21
    %s24 = sphi 0, %s22
    %s36 = sphi 0, %s38
    %s39 = sphi 0, %s36
    %s40 = sphi 0, %s39
    %s56 = sphi 0, %s40
    %s60 = sphi 0, %s60
    %s62 = sphi 0, %s60
    %s63 = sphi 0, %s62
    %s77 = sphi 0, %s63
    %s81 = sphi 0, %s81
    %s83 = sphi 0, %s81
    %s84 = sphi 0, %s83
    %s98 = sphi 0, %s84
    %s106 = sphi 0, %s108
    %s109 = sphi 0, %s106
    %s110 = sphi 0, %s109
    %s126 = sphi 0, %s110
    %s132 = sphi 0, %s134
    %s135 = sphi 0, %s132
    %s136 = sphi 0, %s135
    %s152 = sphi 0, %s136
    %s158 = sphi 0, %s160
    %s161 = sphi 0, %s158
    %s162 = sphi 0, %s161
    %s178 = sphi 0, %s162
  $region4: #{fc_forward.4} parent=0 // loop_header_branch
    %15 = sbr.rel (%p13) target = $region8
  $region5: #{fc_forward.4} parent=0 // loop_body
    %s17 = ssub.s32 %s12, 1
    %s18 = ssub.s32 %s12, 2
    %s25 = sadd.s32 1, %s20
    %p26 = scmp.ge.s32.totalorder %s25, 1
    %s27 = scalar_select %p26, 0, %s25
    %s28 = sadd.s32 1, %s19
    %s29 = scalar_select %p26, %s28, %s19
    %p30 = scmp.ge.s32.totalorder %s29, 2
    %s31 = scalar_select %p30, 0, %s29
    %s32 = ssub.s32 %s19, %s31
    %s33 = ssub.s32 %s20, %s27
    %s34 = sor.u32 %s32, %s33
    %p35 = scmp.eq.s32.totalorder %s34, 0
    %s37 = sadd.s32 %s36, 1
    %s38 = scalar_select %p35, %s36, %s37
    %p41 = pneg %p35
    %p42 = scmp.eq.s32.totalorder %s12, 1
    %p43 = por %p41, %p42
    %p44 = scmp.ne.s32.totalorder %s36, %s39
    %p45 = scmp.eq.s32.totalorder %s12, 0
    %p46 = por %p44, %p45
    %p47 = scmp.ne.s32.totalorder %s36, %s39
    %p48 = scmp.eq.s32.totalorder %s17, 1
    %p49 = por %p47, %p48
    %p50 = scmp.ne.s32.totalorder %s39, %s40
    %p51 = scmp.eq.s32.totalorder %s17, 0
    %p52 = por %p50, %p51
    %p53 = scmp.ne.s32.totalorder %s39, %s40
    %p54 = scmp.eq.s32.totalorder %s18, 1
    %p55 = por %p53, %p54
    %p57 = scmp.ne.s32.totalorder %s40, %s56
    %p58 = scmp.eq.s32.totalorder %s18, 0
    %p59 = por %p57, %p58
    %s61 = sadd.s32 %s60, 1
    %p64 = scmp.eq.s32.totalorder %s12, 1
    %p65 = scmp.ne.s32.totalorder %s60, %s62
    %p66 = scmp.eq.s32.totalorder %s12, 0
    %p67 = por %p65, %p66
    %p68 = scmp.ne.s32.totalorder %s60, %s62
    %p69 = scmp.eq.s32.totalorder %s17, 1
    %p70 = por %p68, %p69
    %p71 = scmp.ne.s32.totalorder %s62, %s63
    %p72 = scmp.eq.s32.totalorder %s17, 0
    %p73 = por %p71, %p72
    %p74 = scmp.ne.s32.totalorder %s62, %s63
    %p75 = scmp.eq.s32.totalorder %s18, 1
    %p76 = por %p74, %p75
    %p78 = scmp.ne.s32.totalorder %s63, %s77
    %p79 = scmp.eq.s32.totalorder %s18, 0
    %p80 = por %p78, %p79
    %s82 = sadd.s32 %s81, 1
    %p85 = scmp.eq.s32.totalorder %s12, 1
    %p86 = scmp.ne.s32.totalorder %s81, %s83
    %p87 = scmp.eq.s32.totalorder %s12, 0
    %p88 = por %p86, %p87
    %p89 = scmp.ne.s32.totalorder %s81, %s83
    %p90 = scmp.eq.s32.totalorder %s17, 1
    %p91 = por %p89, %p90
    %p92 = scmp.ne.s32.totalorder %s83, %s84
    %p93 = scmp.eq.s32.totalorder %s17, 0
    %p94 = por %p92, %p93
    %p95 = scmp.ne.s32.totalorder %s83, %s84
    %p96 = scmp.eq.s32.totalorder %s18, 1
    %p97 = por %p95, %p96
    %p99 = scmp.ne.s32.totalorder %s84, %s98
    %p100 = scmp.eq.s32.totalorder %s18, 0
    %p101 = por %p99, %p100
    %s102 = ssub.s32 %s19, %s31
    %s103 = ssub.s32 %s20, %s27
    %s104 = sor.u32 %s102, %s103
    %p105 = scmp.eq.s32.totalorder %s104, 0
    %s107 = sadd.s32 %s106, 1
    %s108 = scalar_select %p105, %s106, %s107
    %p111 = pneg %p105
    %p112 = scmp.eq.s32.totalorder %s12, 1
    %p113 = por %p111, %p112
    %p114 = scmp.ne.s32.totalorder %s106, %s109
    %p115 = scmp.eq.s32.totalorder %s12, 0
    %p116 = por %p114, %p115
    %p117 = scmp.ne.s32.totalorder %s106, %s109
    %p118 = scmp.eq.s32.totalorder %s17, 1
    %p119 = por %p117, %p118
    %p120 = scmp.ne.s32.totalorder %s109, %s110
    %p121 = scmp.eq.s32.totalorder %s17, 0
    %p122 = por %p120, %p121
    %p123 = scmp.ne.s32.totalorder %s109, %s110
    %p124 = scmp.eq.s32.totalorder %s18, 1
    %p125 = por %p123, %p124
    %p127 = scmp.ne.s32.totalorder %s110, %s126
    %p128 = scmp.eq.s32.totalorder %s18, 0
    %p129 = por %p127, %p128
    %s130 = ssub.s32 %s19, %s31
    %p131 = scmp.eq.s32.totalorder %s130, 0
    %s133 = sadd.s32 %s132, 1
    %s134 = scalar_select %p131, %s132, %s133
    %p137 = pneg %p131
    %p138 = scmp.eq.s32.totalorder %s12, 1
    %p139 = por %p137, %p138
    %p140 = scmp.ne.s32.totalorder %s132, %s135
    %p141 = scmp.eq.s32.totalorder %s12, 0
    %p142 = por %p140, %p141
    %p143 = scmp.ne.s32.totalorder %s132, %s135
    %p144 = scmp.eq.s32.totalorder %s17, 1
    %p145 = por %p143, %p144
    %p146 = scmp.ne.s32.totalorder %s135, %s136
    %p147 = scmp.eq.s32.totalorder %s17, 0
    %p148 = por %p146, %p147
    %p149 = scmp.ne.s32.totalorder %s135, %s136
    %p150 = scmp.eq.s32.totalorder %s18, 1
    %p151 = por %p149, %p150
    %p153 = scmp.ne.s32.totalorder %s136, %s152
    %p154 = scmp.eq.s32.totalorder %s18, 0
    %p155 = por %p153, %p154
    %s156 = ssub.s32 %s19, %s31
    %p157 = scmp.eq.s32.totalorder %s156, 0
    %s159 = sadd.s32 %s158, 1
    %s160 = scalar_select %p157, %s158, %s159
    %p163 = pneg %p157
    %p164 = scmp.eq.s32.totalorder %s12, 1
    %p165 = por %p163, %p164
    %p166 = scmp.ne.s32.totalorder %s158, %s161
    %p167 = scmp.eq.s32.totalorder %s12, 0
    %p168 = por %p166, %p167
    %p169 = scmp.ne.s32.totalorder %s158, %s161
    %p170 = scmp.eq.s32.totalorder %s17, 1
    %p171 = por %p169, %p170
    %p172 = scmp.ne.s32.totalorder %s161, %s162
    %p173 = scmp.eq.s32.totalorder %s17, 0
    %p174 = por %p172, %p173
    %p175 = scmp.ne.s32.totalorder %s161, %s162
    %p176 = scmp.eq.s32.totalorder %s18, 1
    %p177 = por %p175, %p176
    %p179 = scmp.ne.s32.totalorder %s162, %s178
    %p180 = scmp.eq.s32.totalorder %s18, 0
    %p181 = por %p179, %p180
    %p182 = scmp.le.s32.totalorder 1, %s12
    %p183 = scmp.lt.s32.totalorder %s12, 3
    %p184 = pnand %p182, %p183
    %p185 = pneg %p184
    // Predicated region
    $region9: #{fc_forward.4} parent=5 // pred_check
      _
    $region10: #{fc_forward.4} parent=5 // pred_check_branch
      %187 = sbr.rel (%p184) target = $region12
    $region11: #{fc_forward.4} parent=5 // pred_region
      %s188 = ssub.s32 %s12, 1
      // Predicated region
      $region13: #{fc_forward.4} parent=11 // pred_check
        %p189 = pneg %p73
      $region14: #{fc_forward.4} parent=11 // pred_check_branch
        %191 = sbr.rel (%p189) target = $region16
      $region15: #{fc_forward.4} parent=11 // pred_region
        _
      $region16: #{fc_forward.4} parent=11 // pred_fallthru
        _
      // Predicated region
      $region17: #{fc_forward.4} parent=11 // pred_check
        %p192 = pneg %p94
      $region18: #{fc_forward.4} parent=11 // pred_check_branch
        %194 = sbr.rel (%p192) target = $region20
      $region19: #{fc_forward.4} parent=11 // pred_region
        _
      $region20: #{fc_forward.4} parent=11 // pred_fallthru
        _
    $region12: #{fc_forward.4} parent=5 // pred_fallthru
      _
    %p195 = scmp.lt.s32.totalorder %s12, 2
    // Predicated region
    $region21: #{fc_forward.4} parent=5 // pred_check
      %p196 = pneg %p195
    $region22: #{fc_forward.4} parent=5 // pred_check_branch
      %198 = sbr.rel (%p196) target = $region24
    $region23: #{fc_forward.4} parent=5 // pred_region
      // Predicated region
      $region25: #{fc_forward.4} parent=23 // pred_check
        %p199 = pneg %p46
      $region26: #{fc_forward.4} parent=23 // pred_check_branch
        %201 = sbr.rel (%p199) target = $region28
      $region27: #{fc_forward.4} parent=23 // pred_region
        %s202 = smul.u32 2, %s20
        %p203 = scmp.lt.s32.totalorder %s19, 1
        %s204 = scalar_select %p203, %s19, 1
        %p205 = scmp.lt.s32.totalorder %s202, 1
        %s206 = scalar_select %p205, %s202, 1
        %s207 = smul.addr %s204, 2
        %s208 = sadd.s32 %s206, %s207
        %s209 = smul.addr %s208, 4
        %s210 = scalar_lea.vmem %s0, %s209
        %s211 = smul.u32 2, %s20
      $region28: #{fc_forward.4} parent=23 // pred_fallthru
        _
    $region24: #{fc_forward.4} parent=5 // pred_fallthru
      _
    %p212 = scmp.le.s32.totalorder 1, %s12
    %p213 = scmp.lt.s32.totalorder %s12, 3
    %p214 = pnand %p212, %p213
    %p215 = pneg %p214
    // Predicated region
    $region29: #{fc_forward.4} parent=5 // pred_check
      _
    $region30: #{fc_forward.4} parent=5 // pred_check_branch
      %217 = sbr.rel (%p214) target = $region32
    $region31: #{fc_forward.4} parent=5 // pred_region
      %s218 = ssub.s32 %s12, 1
      %s219 = smul.u32 2, %s22
      %p220 = scmp.lt.s32.totalorder %s21, 1
      %s221 = scalar_select %p220, %s21, 1
      %p222 = scmp.lt.s32.totalorder %s219, 1
      %s223 = scalar_select %p222, %s219, 1
      %s224 = smul.addr %s221, 2
      %s225 = sadd.s32 %s223, %s224
      %s226 = smul.addr %s225, 4
      %s227 = scalar_lea.vmem %s0, %s226
      %p228 = pneg %p52
      %p229 = pneg %p49
      %p230 = pneg %p73
      %p231 = pneg %p70
      %p232 = pneg %p94
      %p233 = pneg %p91
      %p234 = pneg %p122
      %p235 = pneg %p119
      %s236 = smul.u32 2, %s22
      %p237 = scmp.lt.s32.totalorder %s21, 1
      %s238 = scalar_select %p237, %s21, 1
      %p239 = scmp.lt.s32.totalorder %s236, 1
      %s240 = scalar_select %p239, %s236, 1
      %s241 = smul.addr %s238, 8
      %s242 = sadd.s32 %s240, %s241
      %s243 = smul.addr %s242, 4
      %s244 = scalar_lea.vmem %s3, %s243
      %p245 = pneg %p148
      %p246 = pneg %p145
      %p247 = scmp.lt.s32.totalorder %s21, 1
      %s248 = scalar_select %p247, %s21, 1
      %s249 = smul.addr %s248, 4
      %s250 = smul.addr %s249, 8
      %s251 = scalar_lea.vmem %s4, %s250
      %p252 = pneg %p174
      %p253 = pneg %p171
      %p254 = scmp.lt.s32.totalorder %s21, 1
      %s255 = scalar_select %p254, %s21, 1
      %s256 = smul.addr %s255, 4
      %s257 = smul.addr %s256, 8
      %s258 = scalar_lea.vmem %s5, %s257
      %s259 = smul.u32 2, %s22
      %p260 = scmp.lt.s32.totalorder %s21, 1
      %s261 = scalar_select %p260, %s21, 1
      %p262 = scmp.lt.s32.totalorder %s259, 1
      %s263 = scalar_select %p262, %s259, 1
      %s264 = smul.addr %s261, 2
      %s265 = sadd.s32 %s263, %s264
      %s266 = smul.addr %s265, 4
      %s267 = scalar_lea.vmem %s0, %s266
      %s268 = smul.u32 2, %s22
      %s269 = smul.u32 2, %s22
      %p270 = scmp.lt.s32.totalorder %s21, 1
      %s271 = scalar_select %p270, %s21, 1
      %p272 = scmp.lt.s32.totalorder %s269, 1
      %s273 = scalar_select %p272, %s269, 1
      %s274 = smul.addr %s271, 8
      %s275 = sadd.s32 %s273, %s274
      %s276 = smul.addr %s275, 4
      %s277 = scalar_lea.vmem %s3, %s276
      %s278 = smul.u32 2, %s22
      %p279 = scmp.lt.s32.totalorder %s21, 1
      %s280 = scalar_select %p279, %s21, 1
      %s281 = smul.addr %s280, 4
      %s282 = smul.addr %s281, 8
      %s283 = scalar_lea.vmem %s4, %s282
      %p284 = scmp.lt.s32.totalorder %s21, 1
      %s285 = scalar_select %p284, %s21, 1
      %s286 = smul.addr %s285, 4
      %s287 = smul.addr %s286, 8
      %s288 = scalar_lea.vmem %s5, %s287
      %p290 = scmp.eq.s32.totalorder %s22, 0
      // Predicated region
      $region33: #{fc_forward.4} parent=31 // pred_check
        %p291 = pneg %p290
      $region34: #{fc_forward.4} parent=31 // pred_check_branch
        %293 = sbr.rel (%p291) target = $region36
      $region35: #{fc_forward.4} parent=31 // pred_region
        %vm294 = vcmask 261120
        %295 = vst.msk [vmem:[%s283] sm:$0xff] %vm294, 0.0
        %296 = vst.msk [vmem:[%s283 + $0x8] sm:$0xff] %vm294, 0.0
        %297 = vst.msk [vmem:[%s283 + $0x10] sm:$0xff] %vm294, 0.0
        %298 = vst.msk [vmem:[%s283 + $0x18] sm:$0xff] %vm294, 0.0
        %vm299 = vcmask 7168
        %300 = vst.msk [vmem:[%s288] sm:$0xff] %vm299, 0.0
        %301 = vst.msk [vmem:[%s288 + $0x8] sm:$0xff] %vm299, 0.0
        %302 = vst.msk [vmem:[%s288 + $0x10] sm:$0xff] %vm299, 0.0
        %303 = vst.msk [vmem:[%s288 + $0x18] sm:$0xff] %vm299, 0.0
      $region36: #{fc_forward.4} parent=31 // pred_fallthru
        _
      %v304 = vld [vmem:[%s267] sm:$0xff]
      %v306 = vcombine.high %v304, %v304
      %v308 = vpack.c.bf16 %v304, %v304
      %v309 = vpack.c.bf16 %v306, %v306
      %v310 = vld [vmem:[%s1] sm:$0xf]
      %v311 = vld [vmem:[%s1 + $0x4] sm:$0xf]
      %v312 = vld [vmem:[%s1 + $0x8] sm:$0xf]
      %v313 = vld [vmem:[%s1 + $0xc] sm:$0xf]
      %v314 = vld [vmem:[%s2] sm:$0xff]
      %v315 = vld [vmem:[%s2 + $0x8] sm:$0xff]
      %v316 = vld [vmem:[%s2 + $0x10] sm:$0xff]
      %v317 = vld [vmem:[%s2 + $0x18] sm:$0xff]
      %319 = vset.pattern.permute.xlu0 0
      %320 = vperm.xlu0 %319, %v314
      %v321 = vpop.permute.xlu0 %320
      %324 = vset.pattern.permute.xlu0 0
      %325 = vperm.xlu0 %324, %v315
      %v326 = vpop.permute.xlu0 %325
      %329 = vset.pattern.permute.xlu0 0
      %330 = vperm.xlu0 %329, %v316
      %v331 = vpop.permute.xlu0 %330
      %334 = vset.pattern.permute.xlu0 0
      %335 = vperm.xlu0 %334, %v317
      %v336 = vpop.permute.xlu0 %335
      %v342 = vunpack.c.l.b16 %v310
      %v343 = vunpack.c.l.b16 %v311
      %v344 = vunpack.c.l.b16 %v312
      %v345 = vunpack.c.l.b16 %v313
      %v346 = vpack.c.b16 %v343, %v342
      %v347 = vpack.c.b16 %v345, %v344
      %vm348 = vcmask 31744
      %v350 = vsel %vm348, %v346, 0
      %v353 = vsel %vm348, %v347, 0
      %vm355 = vcmask 1041408
      %v357 = vsel %vm355, %v308, 0
      %v360 = vsel %vm355, %v309, 0
      %362 = vmatprep.subr.bf16.mxu0 %v360
      %363 = vmatpush1.bf16.msra.mxu0 %v357
      %364 = vmatprep.subr.bf16.mxu0 0
      %365 = vmatpush1.bf16.msra.mxu0 0
      %366 = vmatprep.subr.bf16.mxu0 0
      %367 = vmatpush1.bf16.msra.mxu0 0
      %368 = vmatprep.subr.bf16.mxu0 0
      %369 = vmatpush1.bf16.msra.mxu0 0
      %370 = vmatprep.subr.bf16.mxu0 0
      %371 = vmatpush1.bf16.msra.mxu0 0
      %372 = vmatprep.subr.bf16.mxu0 0
      %373 = vmatpush1.bf16.msra.mxu0 0
      %374 = vmatprep.subr.bf16.mxu0 0
      %375 = vmatpush1.bf16.msra.mxu0 0
      %376 = vmatprep.subr.bf16.mxu0 0
      %377 = vmatpush1.bf16.msra.mxu0 0
      %378 = vmatprep.subr.bf16.mxu0 0
      %379 = vmatpush1.bf16.msra.mxu0 0
      %380 = vmatprep.subr.bf16.mxu0 0
      %381 = vmatpush1.bf16.msra.mxu0 0
      %382 = vmatprep.subr.bf16.mxu0 0
      %383 = vmatpush1.bf16.msra.mxu0 0
      %384 = vmatprep.subr.bf16.mxu0 0
      %385 = vmatpush1.bf16.msra.mxu0 0
      %386 = vmatprep.subr.bf16.mxu0 0
      %387 = vmatpush1.bf16.msra.mxu0 0
      %388 = vmatprep.subr.bf16.mxu0 0
      %389 = vmatpush1.bf16.msra.mxu0 0
      %390 = vmatprep.subr.bf16.mxu0 0
      %391 = vmatpush1.bf16.msra.mxu0 0
      %392 = vmatprep.subr.bf16.mxu0 0
      %393 = vmatpush1.bf16.msra.mxu0 0
      %394 = vmatprep.mubr.bf16.mxu0 0
      %395 = vmatmul.mubr.bf16.gmra.mrb[0].mxu0 %v350
      %v396 = vpop.f32.mrb[0].mxu0
      %v397 = vadd.f32 %v321, %v396
      %v398 = vpop.f32.mrb[0].mxu0
      %v399 = vadd.f32 %v321, %v398
      %v400 = vpop.f32.mrb[0].mxu0
      %v401 = vadd.f32 %v326, %v400
      %v402 = vpop.f32.mrb[0].mxu0
      %v403 = vadd.f32 %v326, %v402
      %404 = vmatprep.mubr.bf16.mxu0 0
      %405 = vmatmul.mubr.bf16.gmra.mrb[0].mxu0 %v353
      %v406 = vpop.f32.mrb[0].mxu0
      %v407 = vadd.f32 %v331, %v406
      %v408 = vpop.f32.mrb[0].mxu0
      %v409 = vadd.f32 %v331, %v408
      %v410 = vpop.f32.mrb[0].mxu0
      %v411 = vadd.f32 %v336, %v410
      %v412 = vpop.f32.mrb[0].mxu0
      %v413 = vadd.f32 %v336, %v412
      %414 = vdwg.mxu0
      %v415 = vmax.f32 %v397, 0.0
      %v416 = vmax.f32 %v399, 0.0
      %v417 = vmax.f32 %v401, 0.0
      %v418 = vmax.f32 %v403, 0.0
      %v419 = vmax.f32 %v407, 0.0
      %v420 = vmax.f32 %v409, 0.0
      %v421 = vmax.f32 %v411, 0.0
      %v422 = vmax.f32 %v413, 0.0
      %v423 = vpack.c.bf16 %v417, %v415
      %v424 = vpack.c.bf16 %v418, %v416
      %v425 = vpack.c.bf16 %v421, %v419
      %v426 = vpack.c.bf16 %v422, %v420
      %v431 = vunpack.c.l.b16 %v423
      %v432 = vunpack.c.l.b16 %v424
      %v433 = vunpack.c.h.b16 %v423
      %v434 = vunpack.c.h.b16 %v424
      %v435 = vunpack.c.l.b16 %v425
      %v436 = vunpack.c.l.b16 %v426
      %v437 = vunpack.c.h.b16 %v425
      %v438 = vunpack.c.h.b16 %v426
      %v439 = vpack.c.b16 %v432, %v431
      %v440 = vpack.c.b16 %v434, %v433
      %v441 = vpack.c.b16 %v436, %v435
      %v442 = vpack.c.b16 %v438, %v437
      %447 = vst [vmem:[%s277] sm:$0xff] %v439
      %448 = vst [vmem:[%s277 + $0x8] sm:$0xff] %v440
      %449 = vst [vmem:[%s277 + $0x10] sm:$0xff] %v441
      %450 = vst [vmem:[%s277 + $0x18] sm:$0xff] %v442
      %v451 = vld [vmem:[%s283] sm:$0xff]
      %v452 = vld [vmem:[%s283 + $0x8] sm:$0xff]
      %v453 = vld [vmem:[%s283 + $0x10] sm:$0xff]
      %v454 = vld [vmem:[%s283 + $0x18] sm:$0xff]
      %455 = vmatprep.subr.mxu0 %v416
      %456 = vmatpush1.xpose.msra.mxu0 %v415
      %457 = vmatprep.subr.mxu0 %v418
      %458 = vmatpush1.xpose.msra.mxu0 %v417
      %459 = vmatprep.subr.mxu0 %v420
      %460 = vmatpush1.xpose.msra.mxu0 %v419
      %461 = vmatprep.subr.mxu0 %v422
      %462 = vmatpush1.xpose.msra.mxu0 %v421
      %463 = vmatprep.subr.mxu0 0.0
      %464 = vmatpush1.xpose.msra.mxu0 0.0
      %465 = vmatprep.subr.mxu0 0.0
      %466 = vmatpush1.xpose.msra.mxu0 0.0
      %467 = vmatprep.subr.mxu0 0.0
      %468 = vmatpush1.xpose.msra.mxu0 0.0
      %469 = vmatprep.subr.mxu0 0.0
      %470 = vmatpush1.xpose.msra.mxu0 0.0
      %471 = vmatprep.subr.mxu0 0.0
      %472 = vmatpush1.xpose.msra.mxu0 0.0
      %473 = vmatprep.subr.mxu0 0.0
      %474 = vmatpush1.xpose.msra.mxu0 0.0
      %475 = vmatprep.subr.mxu0 0.0
      %476 = vmatpush1.xpose.msra.mxu0 0.0
      %477 = vmatprep.subr.mxu0 0.0
      %478 = vmatpush1.xpose.msra.mxu0 0.0
      %479 = vmatprep.subr.mxu0 0.0
      %480 = vmatpush1.xpose.msra.mxu0 0.0
      %481 = vmatprep.subr.mxu0 0.0
      %482 = vmatpush1.xpose.msra.mxu0 0.0
      %483 = vmatprep.subr.mxu0 0.0
      %484 = vmatpush1.xpose.msra.mxu0 0.0
      %485 = vmatprep.subr.mxu0 0.0
      %486 = vmatpush1.xpose.msra.mxu0 0.0
      %487 = vmatprep.subr.mxu0 0.0
      %488 = vmatpush1.xpose.msra.mxu0 0.0
      %489 = vmatprep.subr.mxu0 0.0
      %490 = vmatpush1.xpose.msra.mxu0 0.0
      %491 = vmatprep.subr.mxu0 0.0
      %492 = vmatpush1.xpose.msra.mxu0 0.0
      %493 = vmatprep.subr.mxu0 0.0
      %494 = vmatpush1.xpose.msra.mxu0 0.0
      %495 = vmatprep.subr.mxu0 0.0
      %496 = vmatpush1.xpose.msra.mxu0 0.0
      %497 = vmatprep.subr.mxu0 0.0
      %498 = vmatpush1.xpose.msra.mxu0 0.0
      %499 = vmatprep.subr.mxu0 0.0
      %500 = vmatpush1.xpose.msra.mxu0 0.0
      %501 = vmatprep.subr.mxu0 0.0
      %502 = vmatpush1.xpose.msra.mxu0 0.0
      %503 = vmatprep.subr.mxu0 0.0
      %504 = vmatpush1.xpose.msra.mxu0 0.0
      %505 = vmatprep.subr.mxu0 0.0
      %506 = vmatpush1.xpose.msra.mxu0 0.0
      %507 = vmatprep.subr.mxu0 0.0
      %508 = vmatpush1.xpose.msra.mxu0 0.0
      %509 = vmatprep.subr.mxu0 0.0
      %510 = vmatpush1.xpose.msra.mxu0 0.0
      %511 = vmatprep.subr.mxu0 0.0
      %512 = vmatpush1.xpose.msra.mxu0 0.0
      %513 = vmatprep.subr.mxu0 0.0
      %514 = vmatpush1.xpose.msra.mxu0 0.0
      %515 = vmatprep.subr.mxu0 0.0
      %516 = vmatpush1.xpose.msra.mxu0 0.0
      %517 = vmatprep.subr.mxu0 0.0
      %518 = vmatpush1.xpose.msra.mxu0 0.0
      %519 = vmatprep.mubr.f32.mxu0 %v416
      %520 = vmatmul.mubr.f32.gmra.mrb[0].mxu0 %v415
      %v521 = vpop.f32.mrb[0].mxu0
      %v522 = vadd.f32 0.0, %v521
      %v523 = vpop.f32.mrb[0].mxu0
      %524 = vmatprep.mubr.f32.mxu0 %v418
      %525 = vmatmul.mubr.f32.gmra.mrb[0].mxu0 %v417
      %v526 = vpop.f32.mrb[0].mxu0
      %v527 = vadd.f32 0.0, %v526
      %v528 = vpop.f32.mrb[0].mxu0
      %529 = vmatprep.mubr.f32.mxu0 %v420
      %530 = vmatmul.mubr.f32.gmra.mrb[0].mxu0 %v419
      %v531 = vpop.f32.mrb[0].mxu0
      %v532 = vadd.f32 0.0, %v531
      %v533 = vpop.f32.mrb[0].mxu0
      %534 = vmatprep.mubr.f32.mxu0 %v422
      %535 = vmatmul.mubr.f32.gmra.mrb[0].mxu0 %v421
      %v536 = vpop.f32.mrb[0].mxu0
      %v537 = vadd.f32 0.0, %v536
      %v538 = vpop.f32.mrb[0].mxu0
      %539 = vdwg.mxu0
      %v540 = vadd.f32 %v451, %v522
      %v541 = vadd.f32 %v452, %v527
      %v542 = vadd.f32 %v453, %v532
      %v543 = vadd.f32 %v454, %v537
      %vm544 = vcmask 261120
      %545 = vst.msk [vmem:[%s283] sm:$0xff] %vm544, %v540
      %546 = vst.msk [vmem:[%s283 + $0x8] sm:$0xff] %vm544, %v541
      %547 = vst.msk [vmem:[%s283 + $0x10] sm:$0xff] %vm544, %v542
      %548 = vst.msk [vmem:[%s283 + $0x18] sm:$0xff] %vm544, %v543
      %v549 = vld [vmem:[%s288] sm:$0xff]
      %v550 = vld [vmem:[%s288 + $0x8] sm:$0xff]
      %v551 = vld [vmem:[%s288 + $0x10] sm:$0xff]
      %v552 = vld [vmem:[%s288 + $0x18] sm:$0xff]
      %v553 = vadd.f32 %v415, %v416
      %554 = vadd.xlane.f32.xlu0 %v553
      %v555 = vpop.xlane.xlu0 %554
      %v556 = vadd.f32 %v417, %v418
      %557 = vadd.xlane.f32.xlu0 %v556
      %v558 = vpop.xlane.xlu0 %557
      %v559 = vadd.f32 %v419, %v420
      %560 = vadd.xlane.f32.xlu0 %v559
      %v561 = vpop.xlane.xlu0 %560
      %v562 = vadd.f32 %v421, %v422
      %563 = vadd.xlane.f32.xlu0 %v562
      %v564 = vpop.xlane.xlu0 %563
      %v565 = vadd.f32 %v549, %v555
      %v566 = vadd.f32 %v550, %v558
      %v567 = vadd.f32 %v551, %v561
      %v568 = vadd.f32 %v552, %v564
      %vm569 = vcmask 7168
      %570 = vst.msk [vmem:[%s288] sm:$0xff] %vm569, %v565
      %571 = vst.msk [vmem:[%s288 + $0x8] sm:$0xff] %vm569, %v566
      %572 = vst.msk [vmem:[%s288 + $0x10] sm:$0xff] %vm569, %v567
      %573 = vst.msk [vmem:[%s288 + $0x18] sm:$0xff] %vm569, %v568
      %s574 = smul.u32 2, %s22
      %p575 = scmp.lt.s32.totalorder %s21, 1
      %s576 = scalar_select %p575, %s21, 1
      %p577 = scmp.lt.s32.totalorder %s574, 1
      %s578 = scalar_select %p577, %s574, 1
      %s579 = smul.addr %s576, 8
      %s580 = sadd.s32 %s578, %s579
      %s581 = smul.addr %s580, 4
      %s582 = scalar_lea.vmem %s3, %s581
      %p583 = scmp.lt.s32.totalorder %s21, 1
      %s584 = scalar_select %p583, %s21, 1
      %s585 = smul.addr %s584, 4
      %s586 = smul.addr %s585, 8
      %s587 = scalar_lea.vmem %s4, %s586
      %p588 = scmp.lt.s32.totalorder %s21, 1
      %s589 = scalar_select %p588, %s21, 1
      %s590 = smul.addr %s589, 4
      %s591 = smul.addr %s590, 8
      %s592 = scalar_lea.vmem %s5, %s591
      // Predicated region
      $region37: #{fc_forward.4} parent=31 // pred_check
        %p593 = pneg %p119
      $region38: #{fc_forward.4} parent=31 // pred_check_branch
        %595 = sbr.rel (%p593) target = $region40
      $region39: #{fc_forward.4} parent=31 // pred_region
        %s596 = smul.u32 2, %s22
      $region40: #{fc_forward.4} parent=31 // pred_fallthru
        _
      // Predicated region
      $region41: #{fc_forward.4} parent=31 // pred_check
        %p597 = pneg %p145
      $region42: #{fc_forward.4} parent=31 // pred_check_branch
        %599 = sbr.rel (%p597) target = $region44
      $region43: #{fc_forward.4} parent=31 // pred_region
        _
      $region44: #{fc_forward.4} parent=31 // pred_fallthru
        _
      // Predicated region
      $region45: #{fc_forward.4} parent=31 // pred_check
        %p600 = pneg %p171
      $region46: #{fc_forward.4} parent=31 // pred_check_branch
        %602 = sbr.rel (%p600) target = $region48
      $region47: #{fc_forward.4} parent=31 // pred_region
        _
      $region48: #{fc_forward.4} parent=31 // pred_fallthru
        _
    $region32: #{fc_forward.4} parent=5 // pred_fallthru
      _
    %p603 = scmp.le.s32.totalorder 2, %s12
    // Predicated region
    $region49: #{fc_forward.4} parent=5 // pred_check
      %p604 = pneg %p603
    $region50: #{fc_forward.4} parent=5 // pred_check_branch
      %606 = sbr.rel (%p604) target = $region52
    $region51: #{fc_forward.4} parent=5 // pred_region
      %s607 = ssub.s32 %s12, 2
      // Predicated region
      $region53: #{fc_forward.4} parent=51 // pred_check
        %p608 = pneg %p125
      $region54: #{fc_forward.4} parent=51 // pred_check_branch
        %610 = sbr.rel (%p608) target = $region56
      $region55: #{fc_forward.4} parent=51 // pred_region
        %s611 = smul.u32 2, %s24
        %p612 = scmp.lt.s32.totalorder %s23, 1
        %s613 = scalar_select %p612, %s23, 1
        %p614 = scmp.lt.s32.totalorder %s611, 1
        %s615 = scalar_select %p614, %s611, 1
        %s616 = smul.addr %s613, 8
        %s617 = sadd.s32 %s615, %s616
        %s618 = smul.addr %s617, 4
        %s619 = scalar_lea.vmem %s3, %s618
      $region56: #{fc_forward.4} parent=51 // pred_fallthru
        _
      // Predicated region
      $region57: #{fc_forward.4} parent=51 // pred_check
        %p620 = pneg %p151
      $region58: #{fc_forward.4} parent=51 // pred_check_branch
        %622 = sbr.rel (%p620) target = $region60
      $region59: #{fc_forward.4} parent=51 // pred_region
        %p623 = scmp.lt.s32.totalorder %s23, 1
        %s624 = scalar_select %p623, %s23, 1
        %s625 = smul.addr %s624, 4
        %s626 = smul.addr %s625, 8
        %s627 = scalar_lea.vmem %s4, %s626
      $region60: #{fc_forward.4} parent=51 // pred_fallthru
        _
      // Predicated region
      $region61: #{fc_forward.4} parent=51 // pred_check
        %p628 = pneg %p177
      $region62: #{fc_forward.4} parent=51 // pred_check_branch
        %630 = sbr.rel (%p628) target = $region64
      $region63: #{fc_forward.4} parent=51 // pred_region
        %p631 = scmp.lt.s32.totalorder %s23, 1
        %s632 = scalar_select %p631, %s23, 1
        %s633 = smul.addr %s632, 4
        %s634 = smul.addr %s633, 8
        %s635 = scalar_lea.vmem %s5, %s634
      $region64: #{fc_forward.4} parent=51 // pred_fallthru
        _
    $region52: #{fc_forward.4} parent=5 // pred_fallthru
      _
  $region6: #{fc_forward.4} parent=0 // loop_footer
    %s16 = sadd.s32 1, %s12
  $region7: #{fc_forward.4} parent=0 // loop_footer_branch
    %11 = sbr.rel target = $region3
  $region8: #{fc_forward.4} parent=0 // loop_exit
    _

// kernel: fc_forward.5
$region0: #{fc_forward.5}
  #allocation0 [shape = 'u32[]', space=smem, size = 0x4, offset = 0x4, fixed_abs, tag = 'smem constant byte address 0x4 - core index']
  #allocation1 [shape = 'u32[144,128]{1,0:T(1,128)}', space=vmem, size = 0x12000, scoped, tag = 'internal scratch']
  %s0 = inlined_call_operand.vmem [shape: bf16[2,32,256], index: 0, kind: input, shape index: {}]
  %s1 = inlined_call_operand.vmem [shape: bf16[16,32], index: 1, kind: input, shape index: {}]
  %s2 = inlined_call_operand.vmem [shape: f32[16,1], index: 2, kind: input, shape index: {}]
  %s3 = inlined_call_operand.vmem [shape: f32[2,16,256], index: 3, kind: output, shape index: {}]
  %s4 = sld [smem:[#allocation0]]
  $region45: #{fc_forward.5} parent=0
    _
  %s6 = ssub.s32 1, %s4
  %s7 = scalar_select 0, %s6, %s4
  loop: start=0, step=1, limit=4
  $region2: #{fc_forward.5} parent=0 // loop_pre_header
    _
  $region3: #{fc_forward.5} parent=0 // loop_header
    %s9 = sphi 0, %s13
    %p10 = scmp.ge.s32.totalorder %s9, 4
    %s16 = sphi 0, %s28
    %s17 = sphi 0, %s24
    %s18 = sphi 0, %s16
    %s19 = sphi 0, %s17
    %s20 = sphi 0, %s18
    %s21 = sphi 0, %s19
    %s33 = sphi 0, %s35
    %s36 = sphi 0, %s33
    %s37 = sphi 0, %s36
    %s53 = sphi 0, %s37
    %s57 = sphi 0, %s57
    %s59 = sphi 0, %s57
    %s60 = sphi 0, %s59
    %s74 = sphi 0, %s60
    %s78 = sphi 0, %s78
    %s80 = sphi 0, %s78
    %s81 = sphi 0, %s80
    %s95 = sphi 0, %s81
    %s103 = sphi 0, %s105
    %s106 = sphi 0, %s103
    %s107 = sphi 0, %s106
    %s123 = sphi 0, %s107
  $region4: #{fc_forward.5} parent=0 // loop_header_branch
    %12 = sbr.rel (%p10) target = $region8
  $region5: #{fc_forward.5} parent=0 // loop_body
    %s14 = ssub.s32 %s9, 1
    %s15 = ssub.s32 %s9, 2
    %s22 = sadd.s32 1, %s17
    %p23 = scmp.ge.s32.totalorder %s22, 1
    %s24 = scalar_select %p23, 0, %s22
    %s25 = sadd.s32 1, %s16
    %s26 = scalar_select %p23, %s25, %s16
    %p27 = scmp.ge.s32.totalorder %s26, 2
    %s28 = scalar_select %p27, 0, %s26
    %s29 = ssub.s32 %s16, %s28
    %s30 = ssub.s32 %s17, %s24
    %s31 = sor.u32 %s29, %s30
    %p32 = scmp.eq.s32.totalorder %s31, 0
    %s34 = sadd.s32 %s33, 1
    %s35 = scalar_select %p32, %s33, %s34
    %p38 = pneg %p32
    %p39 = scmp.eq.s32.totalorder %s9, 1
    %p40 = por %p38, %p39
    %p41 = scmp.ne.s32.totalorder %s33, %s36
    %p42 = scmp.eq.s32.totalorder %s9, 0
    %p43 = por %p41, %p42
    %p44 = scmp.ne.s32.totalorder %s33, %s36
    %p45 = scmp.eq.s32.totalorder %s14, 1
    %p46 = por %p44, %p45
    %p47 = scmp.ne.s32.totalorder %s36, %s37
    %p48 = scmp.eq.s32.totalorder %s14, 0
    %p49 = por %p47, %p48
    %p50 = scmp.ne.s32.totalorder %s36, %s37
    %p51 = scmp.eq.s32.totalorder %s15, 1
    %p52 = por %p50, %p51
    %p54 = scmp.ne.s32.totalorder %s37, %s53
    %p55 = scmp.eq.s32.totalorder %s15, 0
    %p56 = por %p54, %p55
    %s58 = sadd.s32 %s57, 1
    %p61 = scmp.eq.s32.totalorder %s9, 1
    %p62 = scmp.ne.s32.totalorder %s57, %s59
    %p63 = scmp.eq.s32.totalorder %s9, 0
    %p64 = por %p62, %p63
    %p65 = scmp.ne.s32.totalorder %s57, %s59
    %p66 = scmp.eq.s32.totalorder %s14, 1
    %p67 = por %p65, %p66
    %p68 = scmp.ne.s32.totalorder %s59, %s60
    %p69 = scmp.eq.s32.totalorder %s14, 0
    %p70 = por %p68, %p69
    %p71 = scmp.ne.s32.totalorder %s59, %s60
    %p72 = scmp.eq.s32.totalorder %s15, 1
    %p73 = por %p71, %p72
    %p75 = scmp.ne.s32.totalorder %s60, %s74
    %p76 = scmp.eq.s32.totalorder %s15, 0
    %p77 = por %p75, %p76
    %s79 = sadd.s32 %s78, 1
    %p82 = scmp.eq.s32.totalorder %s9, 1
    %p83 = scmp.ne.s32.totalorder %s78, %s80
    %p84 = scmp.eq.s32.totalorder %s9, 0
    %p85 = por %p83, %p84
    %p86 = scmp.ne.s32.totalorder %s78, %s80
    %p87 = scmp.eq.s32.totalorder %s14, 1
    %p88 = por %p86, %p87
    %p89 = scmp.ne.s32.totalorder %s80, %s81
    %p90 = scmp.eq.s32.totalorder %s14, 0
    %p91 = por %p89, %p90
    %p92 = scmp.ne.s32.totalorder %s80, %s81
    %p93 = scmp.eq.s32.totalorder %s15, 1
    %p94 = por %p92, %p93
    %p96 = scmp.ne.s32.totalorder %s81, %s95
    %p97 = scmp.eq.s32.totalorder %s15, 0
    %p98 = por %p96, %p97
    %s99 = ssub.s32 %s16, %s28
    %s100 = ssub.s32 %s17, %s24
    %s101 = sor.u32 %s99, %s100
    %p102 = scmp.eq.s32.totalorder %s101, 0
    %s104 = sadd.s32 %s103, 1
    %s105 = scalar_select %p102, %s103, %s104
    %p108 = pneg %p102
    %p109 = scmp.eq.s32.totalorder %s9, 1
    %p110 = por %p108, %p109
    %p111 = scmp.ne.s32.totalorder %s103, %s106
    %p112 = scmp.eq.s32.totalorder %s9, 0
    %p113 = por %p111, %p112
    %p114 = scmp.ne.s32.totalorder %s103, %s106
    %p115 = scmp.eq.s32.totalorder %s14, 1
    %p116 = por %p114, %p115
    %p117 = scmp.ne.s32.totalorder %s106, %s107
    %p118 = scmp.eq.s32.totalorder %s14, 0
    %p119 = por %p117, %p118
    %p120 = scmp.ne.s32.totalorder %s106, %s107
    %p121 = scmp.eq.s32.totalorder %s15, 1
    %p122 = por %p120, %p121
    %p124 = scmp.ne.s32.totalorder %s107, %s123
    %p125 = scmp.eq.s32.totalorder %s15, 0
    %p126 = por %p124, %p125
    %p127 = scmp.le.s32.totalorder 1, %s9
    %p128 = scmp.lt.s32.totalorder %s9, 3
    %p129 = pnand %p127, %p128
    %p130 = pneg %p129
    // Predicated region
    $region9: #{fc_forward.5} parent=5 // pred_check
      _
    $region10: #{fc_forward.5} parent=5 // pred_check_branch
      %132 = sbr.rel (%p129) target = $region12
    $region11: #{fc_forward.5} parent=5 // pred_region
      %s133 = ssub.s32 %s9, 1
      // Predicated region
      $region13: #{fc_forward.5} parent=11 // pred_check
        %p134 = pneg %p70
      $region14: #{fc_forward.5} parent=11 // pred_check_branch
        %136 = sbr.rel (%p134) target = $region16
      $region15: #{fc_forward.5} parent=11 // pred_region
        _
      $region16: #{fc_forward.5} parent=11 // pred_fallthru
        _
      // Predicated region
      $region17: #{fc_forward.5} parent=11 // pred_check
        %p137 = pneg %p91
      $region18: #{fc_forward.5} parent=11 // pred_check_branch
        %139 = sbr.rel (%p137) target = $region20
      $region19: #{fc_forward.5} parent=11 // pred_region
        _
      $region20: #{fc_forward.5} parent=11 // pred_fallthru
        _
    $region12: #{fc_forward.5} parent=5 // pred_fallthru
      _
    %p140 = scmp.lt.s32.totalorder %s9, 2
    // Predicated region
    $region21: #{fc_forward.5} parent=5 // pred_check
      %p141 = pneg %p140
    $region22: #{fc_forward.5} parent=5 // pred_check_branch
      %143 = sbr.rel (%p141) target = $region24
    $region23: #{fc_forward.5} parent=5 // pred_region
      // Predicated region
      $region25: #{fc_forward.5} parent=23 // pred_check
        %p144 = pneg %p43
      $region26: #{fc_forward.5} parent=23 // pred_check_branch
        %146 = sbr.rel (%p144) target = $region28
      $region27: #{fc_forward.5} parent=23 // pred_region
        %s147 = smul.u32 2, %s17
        %p148 = scmp.lt.s32.totalorder %s16, 1
        %s149 = scalar_select %p148, %s16, 1
        %p150 = scmp.lt.s32.totalorder %s147, 1
        %s151 = scalar_select %p150, %s147, 1
        %s152 = smul.addr %s149, 8
        %s153 = sadd.s32 %s151, %s152
        %s154 = smul.addr %s153, 4
        %s155 = scalar_lea.vmem %s0, %s154
        %s156 = smul.u32 2, %s17
      $region28: #{fc_forward.5} parent=23 // pred_fallthru
        _
    $region24: #{fc_forward.5} parent=5 // pred_fallthru
      _
    %p157 = scmp.le.s32.totalorder 1, %s9
    %p158 = scmp.lt.s32.totalorder %s9, 3
    %p159 = pnand %p157, %p158
    %p160 = pneg %p159
    // Predicated region
    $region29: #{fc_forward.5} parent=5 // pred_check
      _
    $region30: #{fc_forward.5} parent=5 // pred_check_branch
      %162 = sbr.rel (%p159) target = $region32
    $region31: #{fc_forward.5} parent=5 // pred_region
      %s163 = ssub.s32 %s9, 1
      %s164 = smul.u32 2, %s19
      %p165 = scmp.lt.s32.totalorder %s18, 1
      %s166 = scalar_select %p165, %s18, 1
      %p167 = scmp.lt.s32.totalorder %s164, 1
      %s168 = scalar_select %p167, %s164, 1
      %s169 = smul.addr %s166, 8
      %s170 = sadd.s32 %s168, %s169
      %s171 = smul.addr %s170, 4
      %s172 = scalar_lea.vmem %s0, %s171
      %p173 = pneg %p49
      %p174 = pneg %p46
      %p175 = pneg %p70
      %p176 = pneg %p67
      %p177 = pneg %p91
      %p178 = pneg %p88
      %p179 = pneg %p119
      %p180 = pneg %p116
      %s181 = smul.u32 2, %s19
      %p182 = scmp.lt.s32.totalorder %s18, 1
      %s183 = scalar_select %p182, %s18, 1
      %p184 = scmp.lt.s32.totalorder %s181, 1
      %s185 = scalar_select %p184, %s181, 1
      %s186 = smul.addr %s183, 4
      %s187 = sadd.s32 %s185, %s186
      %s188 = smul.addr %s187, 8
      %s189 = scalar_lea.vmem %s3, %s188
      %s190 = smul.u32 2, %s19
      %p191 = scmp.lt.s32.totalorder %s18, 1
      %s192 = scalar_select %p191, %s18, 1
      %p193 = scmp.lt.s32.totalorder %s190, 1
      %s194 = scalar_select %p193, %s190, 1
      %s195 = smul.addr %s192, 8
      %s196 = sadd.s32 %s194, %s195
      %s197 = smul.addr %s196, 4
      %s198 = scalar_lea.vmem %s0, %s197
      %s199 = smul.u32 2, %s19
      %s200 = smul.u32 2, %s19
      %p201 = scmp.lt.s32.totalorder %s18, 1
      %s202 = scalar_select %p201, %s18, 1
      %p203 = scmp.lt.s32.totalorder %s200, 1
      %s204 = scalar_select %p203, %s200, 1
      %s205 = smul.addr %s202, 4
      %s206 = sadd.s32 %s204, %s205
      %s207 = smul.addr %s206, 8
      %s208 = scalar_lea.vmem %s3, %s207
      %s209 = smul.u32 2, %s19
      %v211 = vld [vmem:[%s198] sm:$0xff]
      %v212 = vld [vmem:[%s198 + $0x8] sm:$0xff]
      %v213 = vld [vmem:[%s198 + $0x10] sm:$0xff]
      %v214 = vld [vmem:[%s198 + $0x18] sm:$0xff]
      %v215 = vld [vmem:[%s1] sm:$0xf]
      %v216 = vld [vmem:[%s1 + $0x4] sm:$0xf]
      %v217 = vld [vmem:[%s2] sm:$0xff]
      %v218 = vld [vmem:[%s2 + $0x8] sm:$0xff]
      %220 = vset.pattern.permute.xlu0 0
      %221 = vperm.xlu0 %220, %v217
      %v222 = vpop.permute.xlu0 %221
      %225 = vset.pattern.permute.xlu0 0
      %226 = vperm.xlu0 %225, %v218
      %v227 = vpop.permute.xlu0 %226
      %v231 = vunpack.c.l.b16 %v215
      %v232 = vunpack.c.l.b16 %v216
      %v233 = vpack.c.b16 %v232, %v231
      %v238 = vunpack.c.l.b16 %v211
      %v239 = vunpack.c.h.b16 %v211
      %v240 = vunpack.c.l.b16 %v212
      %v241 = vunpack.c.h.b16 %v212
      %v242 = vunpack.c.l.b16 %v213
      %v243 = vunpack.c.h.b16 %v213
      %v244 = vunpack.c.l.b16 %v214
      %v245 = vunpack.c.h.b16 %v214
      %v246 = vpack.c.b16 %v240, %v238
      %v247 = vpack.c.b16 %v241, %v239
      %v248 = vpack.c.b16 %v244, %v242
      %v249 = vpack.c.b16 %v245, %v243
      %vm254 = vcmask 261120
      %v256 = vsel %vm254, %v233, 0
      %258 = vmatprep.subr.bf16.mxu0 %v247
      %259 = vmatpush1.bf16.msra.mxu0 %v246
      %260 = vmatprep.subr.bf16.mxu0 %v249
      %261 = vmatpush1.bf16.msra.mxu0 %v248
      %262 = vmatprep.subr.bf16.mxu0 0
      %263 = vmatpush1.bf16.msra.mxu0 0
      %264 = vmatprep.subr.bf16.mxu0 0
      %265 = vmatpush1.bf16.msra.mxu0 0
      %266 = vmatprep.subr.bf16.mxu0 0
      %267 = vmatpush1.bf16.msra.mxu0 0
      %268 = vmatprep.subr.bf16.mxu0 0
      %269 = vmatpush1.bf16.msra.mxu0 0
      %270 = vmatprep.subr.bf16.mxu0 0
      %271 = vmatpush1.bf16.msra.mxu0 0
      %272 = vmatprep.subr.bf16.mxu0 0
      %273 = vmatpush1.bf16.msra.mxu0 0
      %274 = vmatprep.subr.bf16.mxu0 0
      %275 = vmatpush1.bf16.msra.mxu0 0
      %276 = vmatprep.subr.bf16.mxu0 0
      %277 = vmatpush1.bf16.msra.mxu0 0
      %278 = vmatprep.subr.bf16.mxu0 0
      %279 = vmatpush1.bf16.msra.mxu0 0
      %280 = vmatprep.subr.bf16.mxu0 0
      %281 = vmatpush1.bf16.msra.mxu0 0
      %282 = vmatprep.subr.bf16.mxu0 0
      %283 = vmatpush1.bf16.msra.mxu0 0
      %284 = vmatprep.subr.bf16.mxu0 0
      %285 = vmatpush1.bf16.msra.mxu0 0
      %286 = vmatprep.subr.bf16.mxu0 0
      %287 = vmatpush1.bf16.msra.mxu0 0
      %288 = vmatprep.subr.bf16.mxu0 0
      %289 = vmatpush1.bf16.msra.mxu0 0
      %290 = vmatprep.mubr.bf16.mxu0 0
      %291 = vmatmul.mubr.bf16.gmra.mrb[0].mxu0 %v256
      %v292 = vpop.f32.mrb[0].mxu0
      %v293 = vadd.f32 %v222, %v292
      %v294 = vpop.f32.mrb[0].mxu0
      %v295 = vadd.f32 %v222, %v294
      %v296 = vpop.f32.mrb[0].mxu0
      %v297 = vadd.f32 %v227, %v296
      %v298 = vpop.f32.mrb[0].mxu0
      %v299 = vadd.f32 %v227, %v298
      %300 = vdwg.mxu0
      %v301 = vmax.f32 %v293, 0.0
      %v302 = vmax.f32 %v295, 0.0
      %v303 = vmax.f32 %v297, 0.0
      %v304 = vmax.f32 %v299, 0.0
      %305 = vst [vmem:[%s208] sm:$0xff] %v301
      %306 = vst [vmem:[%s208 + $0x8] sm:$0xff] %v302
      %307 = vst [vmem:[%s208 + $0x10] sm:$0xff] %v303
      %308 = vst [vmem:[%s208 + $0x18] sm:$0xff] %v304
      %s309 = smul.u32 2, %s19
      %p310 = scmp.lt.s32.totalorder %s18, 1
      %s311 = scalar_select %p310, %s18, 1
      %p312 = scmp.lt.s32.totalorder %s309, 1
      %s313 = scalar_select %p312, %s309, 1
      %s314 = smul.addr %s311, 4
      %s315 = sadd.s32 %s313, %s314
      %s316 = smul.addr %s315, 8
      %s317 = scalar_lea.vmem %s3, %s316
      // Predicated region
      $region33: #{fc_forward.5} parent=31 // pred_check
        %p318 = pneg %p116
      $region34: #{fc_forward.5} parent=31 // pred_check_branch
        %320 = sbr.rel (%p318) target = $region36
      $region35: #{fc_forward.5} parent=31 // pred_region
        %s321 = smul.u32 2, %s19
      $region36: #{fc_forward.5} parent=31 // pred_fallthru
        _
    $region32: #{fc_forward.5} parent=5 // pred_fallthru
      _
    %p322 = scmp.le.s32.totalorder 2, %s9
    // Predicated region
    $region37: #{fc_forward.5} parent=5 // pred_check
      %p323 = pneg %p322
    $region38: #{fc_forward.5} parent=5 // pred_check_branch
      %325 = sbr.rel (%p323) target = $region40
    $region39: #{fc_forward.5} parent=5 // pred_region
      %s326 = ssub.s32 %s9, 2
      // Predicated region
      $region41: #{fc_forward.5} parent=39 // pred_check
        %p327 = pneg %p122
      $region42: #{fc_forward.5} parent=39 // pred_check_branch
        %329 = sbr.rel (%p327) target = $region44
      $region43: #{fc_forward.5} parent=39 // pred_region
        %s330 = smul.u32 2, %s21
        %p331 = scmp.lt.s32.totalorder %s20, 1
        %s332 = scalar_select %p331, %s20, 1
        %p333 = scmp.lt.s32.totalorder %s330, 1
        %s334 = scalar_select %p333, %s330, 1
        %s335 = smul.addr %s332, 4
        %s336 = sadd.s32 %s334, %s335
        %s337 = smul.addr %s336, 8
        %s338 = scalar_lea.vmem %s3, %s337
      $region44: #{fc_forward.5} parent=39 // pred_fallthru
        _
    $region40: #{fc_forward.5} parent=5 // pred_fallthru
      _
  $region6: #{fc_forward.5} parent=0 // loop_footer
    %s13 = sadd.s32 1, %s9
  $region7: #{fc_forward.5} parent=0 // loop_footer_branch
    %8 = sbr.rel target = $region3
  $region8: #{fc_forward.5} parent=0 // loop_exit
    _

</llo_original>
